<compile_context>
chip_gen: v5e
topology: v5e:2x2
jax: 0.10.0
libtpu: 0.0.40
codegen_flags: <defaults>
</compile_context>

<pallas_src>
import jax
import jax.numpy as jnp
from jax.experimental import pallas as pl
from jax.experimental.pallas import tpu as pltpu

# Logical dims of the PyTorch module and their lane-padded counterparts.
K_IN = 784                  # 28*28, kept unpadded (full-dim block satisfies (8,128))
H, H_PAD = 200, 256
OUT, OUT_PAD = 10, 128


def _round_up(x, m):
    return ((x + m - 1) // m) * m


def mlp_kernel(x_ref, w1_ref, b1_ref, w2_ref, b2_ref, w3_ref, b3_ref, o_ref):
    # x_ref: (TB, 784) f32; w*: bf16; b*: (1, N) f32; o_ref: (TB, 128) f32.
    x = x_ref[...].astype(jnp.bfloat16)          # in-kernel cast (VPU), no HBM copy
    # fc1 + ReLU (MXU matmul, f32 accumulate, f32 epilogue)
    h1 = jnp.dot(x, w1_ref[...], preferred_element_type=jnp.float32)
    h1 = jnp.maximum(h1 + b1_ref[...], 0.0)
    # fc2 + ReLU
    h2 = jnp.dot(h1.astype(jnp.bfloat16), w2_ref[...],
                 preferred_element_type=jnp.float32)
    h2 = jnp.maximum(h2 + b2_ref[...], 0.0)
    # out (no activation)
    o = jnp.dot(h2.astype(jnp.bfloat16), w3_ref[...],
                preferred_element_type=jnp.float32)
    o_ref[...] = (o + b3_ref[...]).astype(o_ref.dtype)


def prepare_params(params):
    """Zero-pad output dims to lane multiples and cast weights to bf16 (once)."""
    w1, b1, w2, b2, w3, b3 = params
    w1p = jnp.pad(w1, ((0, 0), (0, H_PAD - H))).astype(jnp.bfloat16)          # (784, 256)
    w2p = jnp.pad(w2, ((0, H_PAD - H), (0, H_PAD - H))).astype(jnp.bfloat16)  # (256, 256)
    w3p = jnp.pad(w3, ((0, H_PAD - H), (0, OUT_PAD - OUT))).astype(jnp.bfloat16)  # (256, 128)
    # Biases stay f32 (f32 epilogue on the VPU), shaped (1, N) for broadcast.
    b1p = jnp.pad(b1, (0, H_PAD - H)).reshape(1, H_PAD).astype(jnp.float32)
    b2p = jnp.pad(b2, (0, H_PAD - H)).reshape(1, H_PAD).astype(jnp.float32)
    b3p = jnp.pad(b3, (0, OUT_PAD - OUT)).reshape(1, OUT_PAD).astype(jnp.float32)
    return (w1p, b1p, w2p, b2p, w3p, b3p)


def mlp_mnist_forward(x_nchw, prepared_params, block_b=512):
    """x_nchw: (B, 1, 28, 28) float32. Returns (B, 10) float32 logits."""
    w1, b1, w2, b2, w3, b3 = prepared_params
    B = x_nchw.shape[0]
    x = x_nchw.reshape(B, K_IN)   # flatten(1) -> (B, 784), f32, no pad/cast

    # Batch tile: >=128 rows so the MXU is well occupied; <= block_b to amortize
    # per-step overhead; capped at ~B/2 (rounded to 128) so large batches keep
    # >=2 grid steps and the "parallel" axis shards across both TCs on v7x.
    TB = max(128, min(block_b, _round_up(pl.cdiv(B, 2), 128)))
    grid = (pl.cdiv(B, TB),)

    flops = 2 * B * (K_IN * H + H * H + H * OUT)
    bytes_accessed = (B * K_IN * 4                                   # x (f32)
                      + (K_IN * H_PAD + H_PAD * H_PAD + H_PAD * OUT_PAD) * 2  # weights bf16
                      + (2 * H_PAD + OUT_PAD) * 4                    # biases f32
                      + B * OUT_PAD * 4)                             # logits f32

    out = pl.pallas_call(
        mlp_kernel,
        out_shape=jax.ShapeDtypeStruct((B, OUT_PAD), jnp.float32),
        grid=grid,
        in_specs=[
            pl.BlockSpec((TB, K_IN), lambda i: (i, 0)),          # x: tiled over batch
            pl.BlockSpec((K_IN, H_PAD), lambda i: (0, 0)),       # w1: VMEM-resident
            pl.BlockSpec((1, H_PAD), lambda i: (0, 0)),          # b1
            pl.BlockSpec((H_PAD, H_PAD), lambda i: (0, 0)),      # w2
            pl.BlockSpec((1, H_PAD), lambda i: (0, 0)),          # b2
            pl.BlockSpec((H_PAD, OUT_PAD), lambda i: (0, 0)),    # w3
            pl.BlockSpec((1, OUT_PAD), lambda i: (0, 0)),        # b3
        ],
        out_specs=pl.BlockSpec((TB, OUT_PAD), lambda i: (i, 0)),
        compiler_params=pltpu.CompilerParams(
            dimension_semantics=("parallel",)),                  # megacore on v7x
        cost_estimate=pl.CostEstimate(
            flops=flops, transcendentals=0, bytes_accessed=bytes_accessed),
    )(x, w1, b1, w2, b2, w3, b3)

    return out[:, :OUT]


def init_params(key):
    """PyTorch nn.Linear-style init (uniform +/- 1/sqrt(fan_in)); weights stored
    transposed as (in_features, out_features)."""
    dims = [(K_IN, H), (H, H), (H, OUT)]
    params = []
    for fan_in, fan_out in dims:
        key, kw, kb = jax.random.split(key, 3)
        bound = 1.0 / (fan_in ** 0.5)
        w = jax.random.uniform(kw, (fan_in, fan_out), jnp.float32, -bound, bound)
        b = jax.random.uniform(kb, (fan_out,), jnp.float32, -bound, bound)
        params.extend([w, b])
    return tuple(params)


def reference_forward(x_nchw, params):
    w1, b1, w2, b2, w3, b3 = params
    x = x_nchw.reshape(x_nchw.shape[0], -1)
    h1 = jnp.maximum(x @ w1 + b1, 0.0)
    h2 = jnp.maximum(h1 @ w2 + b2, 0.0)
    return h2 @ w3 + b3


if __name__ == "__main__":
    key = jax.random.PRNGKey(0)
    kp, kx1, kx2 = jax.random.split(key, 3)
    params = init_params(kp)
    prepared = prepare_params(params)

    fwd = jax.jit(lambda x: mlp_mnist_forward(x, prepared))

    # Primary check: small ragged batch exercises the partial-tile (masked) path.
    B = 8
    x = jax.random.normal(kx1, (B, 1, 28, 28), jnp.float32)
    y = jax.block_until_ready(fwd(x))
    y_ref = reference_forward(x, params)
    assert y.shape == (B, OUT)
    assert jnp.allclose(y, y_ref, atol=5e-2, rtol=5e-2), \
        f"max abs err {jnp.max(jnp.abs(y - y_ref))}"

    # Secondary check: B=256 -> TB=128, 2 grid steps (megacore / pipelined path).
    B2 = 256
    x2 = jax.random.normal(kx2, (B2, 1, 28, 28), jnp.float32)
    y2 = jax.block_until_ready(fwd(x2))
    y2_ref = reference_forward(x2, params)
    assert y2.shape == (B2, OUT)
    assert jnp.allclose(y2, y2_ref, atol=5e-2, rtol=5e-2), \
        f"max abs err {jnp.max(jnp.abs(y2 - y2_ref))}"

    print("KERNEL_OK")
</pallas_src>

<mosaic_0001>
module attributes {stable_mosaic.version = 11 : i64} {
  func.func @mlp_kernel(%arg0: i32, %arg1: memref<128x784xf32, #tpu.memory_space<vmem>>, %arg2: memref<784x256xbf16, #tpu.memory_space<vmem>>, %arg3: memref<1x256xf32, #tpu.memory_space<vmem>>, %arg4: memref<256x256xbf16, #tpu.memory_space<vmem>>, %arg5: memref<1x256xf32, #tpu.memory_space<vmem>>, %arg6: memref<256x128xbf16, #tpu.memory_space<vmem>>, %arg7: memref<1x128xf32, #tpu.memory_space<vmem>>, %arg8: memref<128x128xf32, #tpu.memory_space<vmem>>) attributes {dimension_semantics = [#tpu.dimension_semantics<parallel>], iteration_bounds = array<i64: 1>, scalar_prefetch = 0 : i64, scratch_operands = 0 : i64, tpu.core_type = #tpu.core_type<tc>, window_params = [{transform_indices = @transform_0, window_bounds = array<i64: 128, 784>}, {pipeline_mode = #tpu.pipeline_mode<synchronous>, transform_indices = @transform_1, window_bounds = array<i64: 784, 256>}, {pipeline_mode = #tpu.pipeline_mode<synchronous>, transform_indices = @transform_2, window_bounds = array<i64: 1, 256>}, {pipeline_mode = #tpu.pipeline_mode<synchronous>, transform_indices = @transform_3, window_bounds = array<i64: 256, 256>}, {pipeline_mode = #tpu.pipeline_mode<synchronous>, transform_indices = @transform_4, window_bounds = array<i64: 1, 256>}, {pipeline_mode = #tpu.pipeline_mode<synchronous>, transform_indices = @transform_5, window_bounds = array<i64: 256, 128>}, {pipeline_mode = #tpu.pipeline_mode<synchronous>, transform_indices = @transform_6, window_bounds = array<i64: 1, 128>}, {transform_indices = @transform_7, window_bounds = array<i64: 128, 128>}]} {
    %c0 = arith.constant 0 : index
    %c0_0 = arith.constant 0 : index
    %0 = vector.load %arg1[%c0, %c0_0] : memref<128x784xf32, #tpu.memory_space<vmem>>, vector<128x784xf32>
    %1 = arith.truncf %0 : vector<128x784xf32> to vector<128x784xbf16>
    %c0_1 = arith.constant 0 : index
    %c0_2 = arith.constant 0 : index
    %2 = vector.load %arg2[%c0_1, %c0_2] : memref<784x256xbf16, #tpu.memory_space<vmem>>, vector<784x256xbf16>
    %cst = arith.constant dense<0.000000e+00> : vector<128x256xf32>
    %3 = tpu.matmul %1, %2, %cst {dimension_numbers = #tpu.dot_dimension_numbers<[1], [0], [0], [1], [0, 0, 1, 1], [], []>} : vector<128x784xbf16>, vector<784x256xbf16>, vector<128x256xf32> -> vector<128x256xf32>
    %c0_3 = arith.constant 0 : index
    %c0_4 = arith.constant 0 : index
    %4 = vector.load %arg3[%c0_3, %c0_4] : memref<1x256xf32, #tpu.memory_space<vmem>>, vector<1x256xf32>
    %5 = vector.broadcast %4 : vector<1x256xf32> to vector<128x256xf32>
    %6 = arith.addf %3, %5 : vector<128x256xf32>
    %cst_5 = arith.constant 0.000000e+00 : f32
    %7 = vector.broadcast %cst_5 : f32 to vector<128x256xf32>
    %8 = arith.maximumf %6, %7 : vector<128x256xf32>
    %9 = arith.truncf %8 : vector<128x256xf32> to vector<128x256xbf16>
    %c0_6 = arith.constant 0 : index
    %c0_7 = arith.constant 0 : index
    %10 = vector.load %arg4[%c0_6, %c0_7] : memref<256x256xbf16, #tpu.memory_space<vmem>>, vector<256x256xbf16>
    %cst_8 = arith.constant dense<0.000000e+00> : vector<128x256xf32>
    %11 = tpu.matmul %9, %10, %cst_8 {dimension_numbers = #tpu.dot_dimension_numbers<[1], [0], [0], [1], [0, 0, 1, 1], [], []>} : vector<128x256xbf16>, vector<256x256xbf16>, vector<128x256xf32> -> vector<128x256xf32>
    %c0_9 = arith.constant 0 : index
    %c0_10 = arith.constant 0 : index
    %12 = vector.load %arg5[%c0_9, %c0_10] : memref<1x256xf32, #tpu.memory_space<vmem>>, vector<1x256xf32>
    %13 = vector.broadcast %12 : vector<1x256xf32> to vector<128x256xf32>
    %14 = arith.addf %11, %13 : vector<128x256xf32>
    %cst_11 = arith.constant 0.000000e+00 : f32
    %15 = vector.broadcast %cst_11 : f32 to vector<128x256xf32>
    %16 = arith.maximumf %14, %15 : vector<128x256xf32>
    %17 = arith.truncf %16 : vector<128x256xf32> to vector<128x256xbf16>
    %c0_12 = arith.constant 0 : index
    %c0_13 = arith.constant 0 : index
    %18 = vector.load %arg6[%c0_12, %c0_13] : memref<256x128xbf16, #tpu.memory_space<vmem>>, vector<256x128xbf16>
    %cst_14 = arith.constant dense<0.000000e+00> : vector<128x128xf32>
    %19 = tpu.matmul %17, %18, %cst_14 {dimension_numbers = #tpu.dot_dimension_numbers<[1], [0], [0], [1], [0, 0, 1, 1], [], []>} : vector<128x256xbf16>, vector<256x128xbf16>, vector<128x128xf32> -> vector<128x128xf32>
    %c0_15 = arith.constant 0 : index
    %c0_16 = arith.constant 0 : index
    %20 = vector.load %arg7[%c0_15, %c0_16] : memref<1x128xf32, #tpu.memory_space<vmem>>, vector<1x128xf32>
    %21 = vector.broadcast %20 : vector<1x128xf32> to vector<128x128xf32>
    %22 = arith.addf %19, %21 : vector<128x128xf32>
    %c0_17 = arith.constant 0 : index
    %c0_18 = arith.constant 0 : index
    %23 = vector.load %arg8[%c0_17, %c0_18] : memref<128x128xf32, #tpu.memory_space<vmem>>, vector<128x128xf32>
    tpu.vector_store %arg8[%c0_17, %c0_18], %22 {strides = array<i32>} : memref<128x128xf32, #tpu.memory_space<vmem>>, vector<128x128xf32>,
    return
  }
  func.func @transform_0(%arg0: i32) -> (i32, i32) {
    %c0_i32 = arith.constant 0 : i32
    %c0_i32_0 = arith.constant 0 : i32
    return %arg0, %c0_i32 : i32, i32
  }
  func.func @transform_1(%arg0: i32) -> (i32, i32) {
    %c0_i32 = arith.constant 0 : i32
    %c0_i32_0 = arith.constant 0 : i32
    %c0_i32_1 = arith.constant 0 : i32
    return %c0_i32, %c0_i32_0 : i32, i32
  }
  func.func @transform_2(%arg0: i32) -> (i32, i32) {
    %c0_i32 = arith.constant 0 : i32
    %c0_i32_0 = arith.constant 0 : i32
    %c0_i32_1 = arith.constant 0 : i32
    return %c0_i32, %c0_i32_0 : i32, i32
  }
  func.func @transform_3(%arg0: i32) -> (i32, i32) {
    %c0_i32 = arith.constant 0 : i32
    %c0_i32_0 = arith.constant 0 : i32
    %c0_i32_1 = arith.constant 0 : i32
    return %c0_i32, %c0_i32_0 : i32, i32
  }
  func.func @transform_4(%arg0: i32) -> (i32, i32) {
    %c0_i32 = arith.constant 0 : i32
    %c0_i32_0 = arith.constant 0 : i32
    %c0_i32_1 = arith.constant 0 : i32
    return %c0_i32, %c0_i32_0 : i32, i32
  }
  func.func @transform_5(%arg0: i32) -> (i32, i32) {
    %c0_i32 = arith.constant 0 : i32
    %c0_i32_0 = arith.constant 0 : i32
    %c0_i32_1 = arith.constant 0 : i32
    return %c0_i32, %c0_i32_0 : i32, i32
  }
  func.func @transform_6(%arg0: i32) -> (i32, i32) {
    %c0_i32 = arith.constant 0 : i32
    %c0_i32_0 = arith.constant 0 : i32
    %c0_i32_1 = arith.constant 0 : i32
    return %c0_i32, %c0_i32_0 : i32, i32
  }
  func.func @transform_7(%arg0: i32) -> (i32, i32) {
    %c0_i32 = arith.constant 0 : i32
    %c0_i32_0 = arith.constant 0 : i32
    return %arg0, %c0_i32 : i32, i32
  }
}

</mosaic_0001>

<llo_original>
// kernel: _lambda_.1
$region0: #{_lambda_.1}
  #allocation0 [shape = 'u32[]', space=smem, size = 0x4, offset = 0x4, fixed_abs, tag = 'smem constant byte address 0x4 - core index']
  #allocation1 [shape = 'u32[72,128]{1,0:T(1,128)}', space=vmem, size = 0x9000, scoped, tag = 'internal scratch']
  %s0 = inlined_call_operand.vmem [shape: f32[8,784], index: 0, kind: input, shape index: {}]
  %s1 = inlined_call_operand.vmem [shape: bf16[784,256], index: 1, kind: input, shape index: {}]
  %s2 = inlined_call_operand.vmem [shape: f32[1,256], index: 2, kind: input, shape index: {}]
  %s3 = inlined_call_operand.hbm [shape: bf16[256,256], index: 3, kind: input, shape index: {}]
  %s4 = inlined_call_operand.vmem [shape: f32[1,256], index: 4, kind: input, shape index: {}]
  %s5 = inlined_call_operand.hbm [shape: bf16[256,128], index: 5, kind: input, shape index: {}]
  %s6 = inlined_call_operand.vmem [shape: f32[1,128], index: 6, kind: input, shape index: {}]
  %s7 = inlined_call_operand.hbm [shape: f32[8,128], index: 7, kind: output, shape index: {}]
  %s8 = sld [smem:[#allocation0]]
  $region46: #{_lambda_.1} parent=0
    _
  %s10 = ssub.s32 1, %s8
  %s11 = scalar_select 0, %s10, %s8
  $region1: #{_lambda_.1} parent=0
    #allocation2 [shape = 'u8[131072]{0}', space=vmem, size = 0x20000, scoped, tag = 'input window, operand 3, single buffered']
    #allocation3 [shape = 's32[1]{0}', space=sflag, size = 0x4, scoped, tag = 'scoped memory for _lambda_.1']
    #allocation4 [shape = 's32[1]{0}', space=sflag, size = 0x4, scoped, tag = 'scoped memory for _lambda_.1']
    #allocation5 [shape = 'u8[65536]{0}', space=vmem, size = 0x10000, scoped, tag = 'input window, operand 5, single buffered']
    #allocation6 [shape = 's32[1]{0}', space=sflag, size = 0x4, scoped, tag = 'scoped memory for _lambda_.1']
    #allocation7 [shape = 'u8[65536]{0}', space=vmem, size = 0x10000, scoped, tag = 'output window, operand 0, single buffered']
    %12 = vsyncpa [#allocation3], 0
    %13 = vsyncpa [#allocation6], 0
    %14 = vsyncpa [#allocation4], 0
    // Predicated region
    $region2: #{_lambda_.1} parent=1 // pred_check
      _
    $region3: #{_lambda_.1} parent=1 // pred_check_branch
      %16 = sbr.rel (0) target = $region5
    $region4: #{_lambda_.1} parent=1 // pred_region
      _
    $region5: #{_lambda_.1} parent=1 // pred_fallthru
      _
    // Predicated region
    $region6: #{_lambda_.1} parent=1 // pred_check
      _
    $region7: #{_lambda_.1} parent=1 // pred_check_branch
      %18 = sbr.rel (0) target = $region9
    $region8: #{_lambda_.1} parent=1 // pred_region
      _
    $region9: #{_lambda_.1} parent=1 // pred_fallthru
      _
    // Predicated region
    $region10: #{_lambda_.1} parent=1 // pred_check
      _
    $region11: #{_lambda_.1} parent=1 // pred_check_branch
      %20 = sbr.rel (0) target = $region13
    $region12: #{_lambda_.1} parent=1 // pred_region
      _
    $region13: #{_lambda_.1} parent=1 // pred_fallthru
      _
    // Predicated region
    $region14: #{_lambda_.1} parent=1 // pred_check
      _
    $region15: #{_lambda_.1} parent=1 // pred_check_branch
      %22 = sbr.rel (0) target = $region17
    $region16: #{_lambda_.1} parent=1 // pred_region
      %24 = vsyncadd [#allocation3], 0
      %s25 = sshll.u32 %s3, 4
      %s26 = int_to_ptr.hbm [resolvable:$true] %s25
      %s27 = sshll.u32 [#allocation2], 4
      %s28 = int_to_ptr.vmem [resolvable:$true] %s27
      %33 = dma.hbm_to_vmem [thread:$0]  %s26, 4096, %s28, [#allocation3], 128, 128, 8
    $region17: #{_lambda_.1} parent=1 // pred_fallthru
      _
    // Predicated region
    $region18: #{_lambda_.1} parent=1 // pred_check
      _
    $region19: #{_lambda_.1} parent=1 // pred_check_branch
      %35 = sbr.rel (0) target = $region21
    $region20: #{_lambda_.1} parent=1 // pred_region
      _
    $region21: #{_lambda_.1} parent=1 // pred_fallthru
      _
    // Predicated region
    $region22: #{_lambda_.1} parent=1 // pred_check
      _
    $region23: #{_lambda_.1} parent=1 // pred_check_branch
      %37 = sbr.rel (0) target = $region25
    $region24: #{_lambda_.1} parent=1 // pred_region
      %39 = vsyncadd [#allocation6], 0
      %s40 = sshll.u32 %s5, 4
      %s41 = int_to_ptr.hbm [resolvable:$true] %s40
      %s42 = sshll.u32 [#allocation5], 4
      %s43 = int_to_ptr.vmem [resolvable:$true] %s42
      %48 = dma.hbm_to_vmem [thread:$0]  %s41, 2048, %s43, [#allocation6], 64, 64, 4
    $region25: #{_lambda_.1} parent=1 // pred_fallthru
      _
    // Predicated region
    $region26: #{_lambda_.1} parent=1 // pred_check
      _
    $region27: #{_lambda_.1} parent=1 // pred_check_branch
      %50 = sbr.rel (0) target = $region29
    $region28: #{_lambda_.1} parent=1 // pred_region
      _
    $region29: #{_lambda_.1} parent=1 // pred_fallthru
      _
    // Predicated region
    $region30: #{_lambda_.1} parent=1 // pred_check
      _
    $region31: #{_lambda_.1} parent=1 // pred_check_branch
      %52 = sbr.rel (0) target = $region33
    $region32: #{_lambda_.1} parent=1 // pred_region
      %54 = dma.done [#allocation3], 4096
    $region33: #{_lambda_.1} parent=1 // pred_fallthru
      _
    // Predicated region
    $region34: #{_lambda_.1} parent=1 // pred_check
      _
    $region35: #{_lambda_.1} parent=1 // pred_check_branch
      %56 = sbr.rel (0) target = $region37
    $region36: #{_lambda_.1} parent=1 // pred_region
      %58 = dma.done [#allocation6], 2048
    $region37: #{_lambda_.1} parent=1 // pred_fallthru
      _
    %v60 = vld [vmem:[%s0] sm:$0xff]
    %v61 = vld [vmem:[%s0 + $0x8] sm:$0xff]
    %v62 = vld [vmem:[%s0 + $0x10] sm:$0xff]
    %v63 = vld [vmem:[%s0 + $0x18] sm:$0xff]
    %v64 = vld [vmem:[%s0 + $0x20] sm:$0xff]
    %v65 = vld [vmem:[%s0 + $0x28] sm:$0xff]
    %v66 = vld [vmem:[%s0 + $0x30] sm:$0xff]
    %v67 = vld [vmem:[%s0 + $0x38] sm:$0xff]
    %v68 = vld [vmem:[%s0 + $0x40] sm:$0xff]
    %v69 = vld [vmem:[%s0 + $0x48] sm:$0xff]
    %v70 = vld [vmem:[%s0 + $0x50] sm:$0xff]
    %v71 = vld [vmem:[%s0 + $0x58] sm:$0xff]
    %v72 = vld [vmem:[%s0 + $0x60] sm:$0xff]
    %v73 = vld [vmem:[%s0 + $0x68] sm:$0xff]
    %v74 = vld [vmem:[%s0 + $0x70] sm:$0xff]
    %v75 = vld [vmem:[%s0 + $0x78] sm:$0xff]
    %v76 = vld [vmem:[%s0 + $0x80] sm:$0xff]
    %v77 = vld [vmem:[%s0 + $0x88] sm:$0xff]
    %v78 = vld [vmem:[%s0 + $0x90] sm:$0xff]
    %v79 = vld [vmem:[%s0 + $0x98] sm:$0xff]
    %v80 = vld [vmem:[%s0 + $0xa0] sm:$0xff]
    %v81 = vld [vmem:[%s0 + $0xa8] sm:$0xff]
    %v82 = vld [vmem:[%s0 + $0xb0] sm:$0xff]
    %v83 = vld [vmem:[%s0 + $0xb8] sm:$0xff]
    %v84 = vld [vmem:[%s0 + $0xc0] sm:$0xff]
    %v85 = vld [vmem:[%s0 + $0xc8] sm:$0xff]
    %v86 = vld [vmem:[%s0 + $0xd0] sm:$0xff]
    %v87 = vld [vmem:[%s0 + $0xd8] sm:$0xff]
    %v88 = vld [vmem:[%s0 + $0xe0] sm:$0xff]
    %v89 = vld [vmem:[%s0 + $0xe8] sm:$0xff]
    %v90 = vld [vmem:[%s0 + $0xf0] sm:$0xff]
    %v91 = vld [vmem:[%s0 + $0xf8] sm:$0xff]
    %v92 = vld [vmem:[%s0 + $0x100] sm:$0xff]
    %v93 = vld [vmem:[%s0 + $0x108] sm:$0xff]
    %v94 = vld [vmem:[%s0 + $0x110] sm:$0xff]
    %v95 = vld [vmem:[%s0 + $0x118] sm:$0xff]
    %v96 = vld [vmem:[%s0 + $0x120] sm:$0xff]
    %v97 = vld [vmem:[%s0 + $0x128] sm:$0xff]
    %v98 = vld [vmem:[%s0 + $0x130] sm:$0xff]
    %v99 = vld [vmem:[%s0 + $0x138] sm:$0xff]
    %v100 = vld [vmem:[%s0 + $0x140] sm:$0xff]
    %v101 = vld [vmem:[%s0 + $0x148] sm:$0xff]
    %v102 = vld [vmem:[%s0 + $0x150] sm:$0xff]
    %v103 = vld [vmem:[%s0 + $0x158] sm:$0xff]
    %v104 = vld [vmem:[%s0 + $0x160] sm:$0xff]
    %v105 = vld [vmem:[%s0 + $0x168] sm:$0xff]
    %v106 = vld [vmem:[%s0 + $0x170] sm:$0xff]
    %v107 = vld [vmem:[%s0 + $0x178] sm:$0xff]
    %v108 = vld [vmem:[%s0 + $0x180] sm:$0xff]
    %v109 = vld [vmem:[%s0 + $0x188] sm:$0xff]
    %v110 = vld [vmem:[%s0 + $0x190] sm:$0xff]
    %v111 = vld [vmem:[%s0 + $0x198] sm:$0xff]
    %v112 = vld [vmem:[%s0 + $0x1a0] sm:$0xff]
    %v113 = vld [vmem:[%s0 + $0x1a8] sm:$0xff]
    %v114 = vld [vmem:[%s0 + $0x1b0] sm:$0xff]
    %v115 = vld [vmem:[%s0 + $0x1b8] sm:$0xff]
    %v116 = vld [vmem:[%s0 + $0x1c0] sm:$0xff]
    %v117 = vld [vmem:[%s0 + $0x1c8] sm:$0xff]
    %v118 = vld [vmem:[%s0 + $0x1d0] sm:$0xff]
    %v119 = vld [vmem:[%s0 + $0x1d8] sm:$0xff]
    %v120 = vld [vmem:[%s0 + $0x1e0] sm:$0xff]
    %v121 = vld [vmem:[%s0 + $0x1e8] sm:$0xff]
    %v122 = vld [vmem:[%s0 + $0x1f0] sm:$0xff]
    %v123 = vld [vmem:[%s0 + $0x1f8] sm:$0xff]
    %v124 = vld [vmem:[%s0 + $0x200] sm:$0xff]
    %v125 = vld [vmem:[%s0 + $0x208] sm:$0xff]
    %v126 = vld [vmem:[%s0 + $0x210] sm:$0xff]
    %v127 = vld [vmem:[%s0 + $0x218] sm:$0xff]
    %v128 = vld [vmem:[%s0 + $0x220] sm:$0xff]
    %v129 = vld [vmem:[%s0 + $0x228] sm:$0xff]
    %v130 = vld [vmem:[%s0 + $0x230] sm:$0xff]
    %v131 = vld [vmem:[%s0 + $0x238] sm:$0xff]
    %v132 = vld [vmem:[%s0 + $0x240] sm:$0xff]
    %v133 = vld [vmem:[%s0 + $0x248] sm:$0xff]
    %v134 = vld [vmem:[%s0 + $0x250] sm:$0xff]
    %v135 = vld [vmem:[%s0 + $0x258] sm:$0xff]
    %v136 = vld [vmem:[%s0 + $0x260] sm:$0xff]
    %v137 = vld [vmem:[%s0 + $0x268] sm:$0xff]
    %v138 = vld [vmem:[%s0 + $0x270] sm:$0xff]
    %v139 = vld [vmem:[%s0 + $0x278] sm:$0xff]
    %v140 = vld [vmem:[%s0 + $0x280] sm:$0xff]
    %v141 = vld [vmem:[%s0 + $0x288] sm:$0xff]
    %v142 = vld [vmem:[%s0 + $0x290] sm:$0xff]
    %v143 = vld [vmem:[%s0 + $0x298] sm:$0xff]
    %v144 = vld [vmem:[%s0 + $0x2a0] sm:$0xff]
    %v145 = vld [vmem:[%s0 + $0x2a8] sm:$0xff]
    %v146 = vld [vmem:[%s0 + $0x2b0] sm:$0xff]
    %v147 = vld [vmem:[%s0 + $0x2b8] sm:$0xff]
    %v148 = vld [vmem:[%s0 + $0x2c0] sm:$0xff]
    %v149 = vld [vmem:[%s0 + $0x2c8] sm:$0xff]
    %v150 = vld [vmem:[%s0 + $0x2d0] sm:$0xff]
    %v151 = vld [vmem:[%s0 + $0x2d8] sm:$0xff]
    %v152 = vld [vmem:[%s0 + $0x2e0] sm:$0xff]
    %v153 = vld [vmem:[%s0 + $0x2e8] sm:$0xff]
    %v154 = vld [vmem:[%s0 + $0x2f0] sm:$0xff]
    %v155 = vld [vmem:[%s0 + $0x2f8] sm:$0xff]
    %v156 = vld [vmem:[%s0 + $0x300] sm:$0xff]
    %v157 = vld [vmem:[%s0 + $0x308] sm:$0xff]
    %v158 = vld [vmem:[%s0 + $0x310] sm:$0xff]
    %v159 = vld [vmem:[%s0 + $0x318] sm:$0xff]
    %v160 = vld [vmem:[%s0 + $0x320] sm:$0xff]
    %v161 = vld [vmem:[%s0 + $0x328] sm:$0xff]
    %v162 = vld [vmem:[%s0 + $0x330] sm:$0xff]
    %v163 = vld [vmem:[%s0 + $0x338] sm:$0xff]
    %v164 = vld [vmem:[%s0 + $0x340] sm:$0xff]
    %v165 = vld [vmem:[%s0 + $0x348] sm:$0xff]
    %v166 = vld [vmem:[%s0 + $0x350] sm:$0xff]
    %v167 = vld [vmem:[%s0 + $0x358] sm:$0xff]
    %v168 = vld [vmem:[%s0 + $0x360] sm:$0xff]
    %v169 = vld [vmem:[%s0 + $0x368] sm:$0xff]
    %v170 = vld [vmem:[%s0 + $0x370] sm:$0xff]
    %v171 = vld [vmem:[%s0 + $0x378] sm:$0xff]
    %v172 = vpack.c.bf16 %v67, %v60
    %v173 = vpack.c.bf16 %v68, %v61
    %v174 = vpack.c.bf16 %v69, %v62
    %v175 = vpack.c.bf16 %v70, %v63
    %v176 = vpack.c.bf16 %v71, %v64
    %v177 = vpack.c.bf16 %v72, %v65
    %v178 = vpack.c.bf16 %v73, %v66
    %v179 = vpack.c.bf16 %v81, %v74
    %v180 = vpack.c.bf16 %v82, %v75
    %v181 = vpack.c.bf16 %v83, %v76
    %v182 = vpack.c.bf16 %v84, %v77
    %v183 = vpack.c.bf16 %v85, %v78
    %v184 = vpack.c.bf16 %v86, %v79
    %v185 = vpack.c.bf16 %v87, %v80
    %v186 = vpack.c.bf16 %v95, %v88
    %v187 = vpack.c.bf16 %v96, %v89
    %v188 = vpack.c.bf16 %v97, %v90
    %v189 = vpack.c.bf16 %v98, %v91
    %v190 = vpack.c.bf16 %v99, %v92
    %v191 = vpack.c.bf16 %v100, %v93
    %v192 = vpack.c.bf16 %v101, %v94
    %v193 = vpack.c.bf16 %v109, %v102
    %v194 = vpack.c.bf16 %v110, %v103
    %v195 = vpack.c.bf16 %v111, %v104
    %v196 = vpack.c.bf16 %v112, %v105
    %v197 = vpack.c.bf16 %v113, %v106
    %v198 = vpack.c.bf16 %v114, %v107
    %v199 = vpack.c.bf16 %v115, %v108
    %v200 = vpack.c.bf16 %v123, %v116
    %v201 = vpack.c.bf16 %v124, %v117
    %v202 = vpack.c.bf16 %v125, %v118
    %v203 = vpack.c.bf16 %v126, %v119
    %v204 = vpack.c.bf16 %v127, %v120
    %v205 = vpack.c.bf16 %v128, %v121
    %v206 = vpack.c.bf16 %v129, %v122
    %v207 = vpack.c.bf16 %v137, %v130
    %v208 = vpack.c.bf16 %v138, %v131
    %v209 = vpack.c.bf16 %v139, %v132
    %v210 = vpack.c.bf16 %v140, %v133
    %v211 = vpack.c.bf16 %v141, %v134
    %v212 = vpack.c.bf16 %v142, %v135
    %v213 = vpack.c.bf16 %v143, %v136
    %v214 = vpack.c.bf16 %v151, %v144
    %v215 = vpack.c.bf16 %v152, %v145
    %v216 = vpack.c.bf16 %v153, %v146
    %v217 = vpack.c.bf16 %v154, %v147
    %v218 = vpack.c.bf16 %v155, %v148
    %v219 = vpack.c.bf16 %v156, %v149
    %v220 = vpack.c.bf16 %v157, %v150
    %v221 = vpack.c.bf16 %v165, %v158
    %v222 = vpack.c.bf16 %v166, %v159
    %v223 = vpack.c.bf16 %v167, %v160
    %v224 = vpack.c.bf16 %v168, %v161
    %v225 = vpack.c.bf16 %v169, %v162
    %v226 = vpack.c.bf16 %v170, %v163
    %v227 = vpack.c.bf16 %v171, %v164
    %v228 = vld [vmem:[%s1] sm:$0xff]
    %v229 = vld [vmem:[%s1 + $0x8] sm:$0xff]
    %v230 = vld [vmem:[%s1 + $0x10] sm:$0xff]
    %v231 = vld [vmem:[%s1 + $0x18] sm:$0xff]
    %v232 = vld [vmem:[%s1 + $0x20] sm:$0xff]
    %v233 = vld [vmem:[%s1 + $0x28] sm:$0xff]
    %v234 = vld [vmem:[%s1 + $0x30] sm:$0xff]
    %v235 = vld [vmem:[%s1 + $0x38] sm:$0xff]
    %v236 = vld [vmem:[%s1 + $0x40] sm:$0xff]
    %v237 = vld [vmem:[%s1 + $0x48] sm:$0xff]
    %v238 = vld [vmem:[%s1 + $0x50] sm:$0xff]
    %v239 = vld [vmem:[%s1 + $0x58] sm:$0xff]
    %v240 = vld [vmem:[%s1 + $0x60] sm:$0xff]
    %v241 = vld [vmem:[%s1 + $0x68] sm:$0xff]
    %v242 = vld [vmem:[%s1 + $0x70] sm:$0xff]
    %v243 = vld [vmem:[%s1 + $0x78] sm:$0xff]
    %v244 = vld [vmem:[%s1 + $0x80] sm:$0xff]
    %v245 = vld [vmem:[%s1 + $0x88] sm:$0xff]
    %v246 = vld [vmem:[%s1 + $0x90] sm:$0xff]
    %v247 = vld [vmem:[%s1 + $0x98] sm:$0xff]
    %v248 = vld [vmem:[%s1 + $0xa0] sm:$0xff]
    %v249 = vld [vmem:[%s1 + $0xa8] sm:$0xff]
    %v250 = vld [vmem:[%s1 + $0xb0] sm:$0xff]
    %v251 = vld [vmem:[%s1 + $0xb8] sm:$0xff]
    %v252 = vld [vmem:[%s1 + $0xc0] sm:$0xff]
    %v253 = vld [vmem:[%s1 + $0xc8] sm:$0xff]
    %v254 = vld [vmem:[%s1 + $0xd0] sm:$0xff]
    %v255 = vld [vmem:[%s1 + $0xd8] sm:$0xff]
    %v256 = vld [vmem:[%s1 + $0xe0] sm:$0xff]
    %v257 = vld [vmem:[%s1 + $0xe8] sm:$0xff]
    %v258 = vld [vmem:[%s1 + $0xf0] sm:$0xff]
    %v259 = vld [vmem:[%s1 + $0xf8] sm:$0xff]
    %v260 = vld [vmem:[%s1 + $0x100] sm:$0xff]
    %v261 = vld [vmem:[%s1 + $0x108] sm:$0xff]
    %v262 = vld [vmem:[%s1 + $0x110] sm:$0xff]
    %v263 = vld [vmem:[%s1 + $0x118] sm:$0xff]
    %v264 = vld [vmem:[%s1 + $0x120] sm:$0xff]
    %v265 = vld [vmem:[%s1 + $0x128] sm:$0xff]
    %v266 = vld [vmem:[%s1 + $0x130] sm:$0xff]
    %v267 = vld [vmem:[%s1 + $0x138] sm:$0xff]
    %v268 = vld [vmem:[%s1 + $0x140] sm:$0xff]
    %v269 = vld [vmem:[%s1 + $0x148] sm:$0xff]
    %v270 = vld [vmem:[%s1 + $0x150] sm:$0xff]
    %v271 = vld [vmem:[%s1 + $0x158] sm:$0xff]
    %v272 = vld [vmem:[%s1 + $0x160] sm:$0xff]
    %v273 = vld [vmem:[%s1 + $0x168] sm:$0xff]
    %v274 = vld [vmem:[%s1 + $0x170] sm:$0xff]
    %v275 = vld [vmem:[%s1 + $0x178] sm:$0xff]
    %v276 = vld [vmem:[%s1 + $0x180] sm:$0xff]
    %v277 = vld [vmem:[%s1 + $0x188] sm:$0xff]
    %v278 = vld [vmem:[%s1 + $0x190] sm:$0xff]
    %v279 = vld [vmem:[%s1 + $0x198] sm:$0xff]
    %v280 = vld [vmem:[%s1 + $0x1a0] sm:$0xff]
    %v281 = vld [vmem:[%s1 + $0x1a8] sm:$0xff]
    %v282 = vld [vmem:[%s1 + $0x1b0] sm:$0xff]
    %v283 = vld [vmem:[%s1 + $0x1b8] sm:$0xff]
    %v284 = vld [vmem:[%s1 + $0x1c0] sm:$0xff]
    %v285 = vld [vmem:[%s1 + $0x1c8] sm:$0xff]
    %v286 = vld [vmem:[%s1 + $0x1d0] sm:$0xff]
    %v287 = vld [vmem:[%s1 + $0x1d8] sm:$0xff]
    %v288 = vld [vmem:[%s1 + $0x1e0] sm:$0xff]
    %v289 = vld [vmem:[%s1 + $0x1e8] sm:$0xff]
    %v290 = vld [vmem:[%s1 + $0x1f0] sm:$0xff]
    %v291 = vld [vmem:[%s1 + $0x1f8] sm:$0xff]
    %v292 = vld [vmem:[%s1 + $0x200] sm:$0xff]
    %v293 = vld [vmem:[%s1 + $0x208] sm:$0xff]
    %v294 = vld [vmem:[%s1 + $0x210] sm:$0xff]
    %v295 = vld [vmem:[%s1 + $0x218] sm:$0xff]
    %v296 = vld [vmem:[%s1 + $0x220] sm:$0xff]
    %v297 = vld [vmem:[%s1 + $0x228] sm:$0xff]
    %v298 = vld [vmem:[%s1 + $0x230] sm:$0xff]
    %v299 = vld [vmem:[%s1 + $0x238] sm:$0xff]
    %v300 = vld [vmem:[%s1 + $0x240] sm:$0xff]
    %v301 = vld [vmem:[%s1 + $0x248] sm:$0xff]
    %v302 = vld [vmem:[%s1 + $0x250] sm:$0xff]
    %v303 = vld [vmem:[%s1 + $0x258] sm:$0xff]
    %v304 = vld [vmem:[%s1 + $0x260] sm:$0xff]
    %v305 = vld [vmem:[%s1 + $0x268] sm:$0xff]
    %v306 = vld [vmem:[%s1 + $0x270] sm:$0xff]
    %v307 = vld [vmem:[%s1 + $0x278] sm:$0xff]
    %v308 = vld [vmem:[%s1 + $0x280] sm:$0xff]
    %v309 = vld [vmem:[%s1 + $0x288] sm:$0xff]
    %v310 = vld [vmem:[%s1 + $0x290] sm:$0xff]
    %v311 = vld [vmem:[%s1 + $0x298] sm:$0xff]
    %v312 = vld [vmem:[%s1 + $0x2a0] sm:$0xff]
    %v313 = vld [vmem:[%s1 + $0x2a8] sm:$0xff]
    %v314 = vld [vmem:[%s1 + $0x2b0] sm:$0xff]
    %v315 = vld [vmem:[%s1 + $0x2b8] sm:$0xff]
    %v316 = vld [vmem:[%s1 + $0x2c0] sm:$0xff]
    %v317 = vld [vmem:[%s1 + $0x2c8] sm:$0xff]
    %v318 = vld [vmem:[%s1 + $0x2d0] sm:$0xff]
    %v319 = vld [vmem:[%s1 + $0x2d8] sm:$0xff]
    %v320 = vld [vmem:[%s1 + $0x2e0] sm:$0xff]
    %v321 = vld [vmem:[%s1 + $0x2e8] sm:$0xff]
    %v322 = vld [vmem:[%s1 + $0x2f0] sm:$0xff]
    %v323 = vld [vmem:[%s1 + $0x2f8] sm:$0xff]
    %v324 = vld [vmem:[%s1 + $0x300] sm:$0xff]
    %v325 = vld [vmem:[%s1 + $0x308] sm:$0xff]
    %v326 = vld [vmem:[%s2] sm:$0x3]
    %v328 = vperm.slane %v326, 0
    %v329 = vperm.slane %v326, 1
    %v430 = vunpack.c.l.b16 %v228
    %v431 = vunpack.c.h.b16 %v228
    %v432 = vunpack.c.l.b16 %v229
    %v433 = vunpack.c.h.b16 %v229
    %v434 = vunpack.c.l.b16 %v230
    %v435 = vunpack.c.h.b16 %v230
    %v436 = vunpack.c.l.b16 %v231
    %v437 = vunpack.c.h.b16 %v231
    %v438 = vunpack.c.l.b16 %v232
    %v439 = vunpack.c.h.b16 %v232
    %v440 = vunpack.c.l.b16 %v233
    %v441 = vunpack.c.h.b16 %v233
    %v442 = vunpack.c.l.b16 %v234
    %v443 = vunpack.c.h.b16 %v234
    %v444 = vunpack.c.l.b16 %v235
    %v445 = vunpack.c.h.b16 %v235
    %v446 = vunpack.c.l.b16 %v236
    %v447 = vunpack.c.h.b16 %v236
    %v448 = vunpack.c.l.b16 %v237
    %v449 = vunpack.c.h.b16 %v237
    %v450 = vunpack.c.l.b16 %v238
    %v451 = vunpack.c.h.b16 %v238
    %v452 = vunpack.c.l.b16 %v239
    %v453 = vunpack.c.h.b16 %v239
    %v454 = vunpack.c.l.b16 %v240
    %v455 = vunpack.c.h.b16 %v240
    %v456 = vunpack.c.l.b16 %v241
    %v457 = vunpack.c.h.b16 %v241
    %v458 = vunpack.c.l.b16 %v242
    %v459 = vunpack.c.h.b16 %v242
    %v460 = vunpack.c.l.b16 %v243
    %v461 = vunpack.c.h.b16 %v243
    %v462 = vunpack.c.l.b16 %v244
    %v463 = vunpack.c.h.b16 %v244
    %v464 = vunpack.c.l.b16 %v245
    %v465 = vunpack.c.h.b16 %v245
    %v466 = vunpack.c.l.b16 %v246
    %v467 = vunpack.c.h.b16 %v246
    %v468 = vunpack.c.l.b16 %v247
    %v469 = vunpack.c.h.b16 %v247
    %v470 = vunpack.c.l.b16 %v248
    %v471 = vunpack.c.h.b16 %v248
    %v472 = vunpack.c.l.b16 %v249
    %v473 = vunpack.c.h.b16 %v249
    %v474 = vunpack.c.l.b16 %v250
    %v475 = vunpack.c.h.b16 %v250
    %v476 = vunpack.c.l.b16 %v251
    %v477 = vunpack.c.h.b16 %v251
    %v478 = vunpack.c.l.b16 %v252
    %v479 = vunpack.c.h.b16 %v252
    %v480 = vunpack.c.l.b16 %v253
    %v481 = vunpack.c.h.b16 %v253
    %v482 = vunpack.c.l.b16 %v254
    %v483 = vunpack.c.h.b16 %v254
    %v484 = vunpack.c.l.b16 %v255
    %v485 = vunpack.c.h.b16 %v255
    %v486 = vunpack.c.l.b16 %v256
    %v487 = vunpack.c.h.b16 %v256
    %v488 = vunpack.c.l.b16 %v257
    %v489 = vunpack.c.h.b16 %v257
    %v490 = vunpack.c.l.b16 %v258
    %v491 = vunpack.c.h.b16 %v258
    %v492 = vunpack.c.l.b16 %v259
    %v493 = vunpack.c.h.b16 %v259
    %v494 = vunpack.c.l.b16 %v260
    %v495 = vunpack.c.h.b16 %v260
    %v496 = vunpack.c.l.b16 %v261
    %v497 = vunpack.c.h.b16 %v261
    %v498 = vunpack.c.l.b16 %v262
    %v499 = vunpack.c.h.b16 %v262
    %v500 = vunpack.c.l.b16 %v263
    %v501 = vunpack.c.h.b16 %v263
    %v502 = vunpack.c.l.b16 %v264
    %v503 = vunpack.c.h.b16 %v264
    %v504 = vunpack.c.l.b16 %v265
    %v505 = vunpack.c.h.b16 %v265
    %v506 = vunpack.c.l.b16 %v266
    %v507 = vunpack.c.h.b16 %v266
    %v508 = vunpack.c.l.b16 %v267
    %v509 = vunpack.c.h.b16 %v267
    %v510 = vunpack.c.l.b16 %v268
    %v511 = vunpack.c.h.b16 %v268
    %v512 = vunpack.c.l.b16 %v269
    %v513 = vunpack.c.h.b16 %v269
    %v514 = vunpack.c.l.b16 %v270
    %v515 = vunpack.c.h.b16 %v270
    %v516 = vunpack.c.l.b16 %v271
    %v517 = vunpack.c.h.b16 %v271
    %v518 = vunpack.c.l.b16 %v272
    %v519 = vunpack.c.h.b16 %v272
    %v520 = vunpack.c.l.b16 %v273
    %v521 = vunpack.c.h.b16 %v273
    %v522 = vunpack.c.l.b16 %v274
    %v523 = vunpack.c.h.b16 %v274
    %v524 = vunpack.c.l.b16 %v275
    %v525 = vunpack.c.h.b16 %v275
    %v526 = vunpack.c.l.b16 %v276
    %v527 = vunpack.c.h.b16 %v276
    %v528 = vunpack.c.l.b16 %v277
    %v529 = vunpack.c.h.b16 %v277
    %v530 = vunpack.c.l.b16 %v278
    %v531 = vunpack.c.h.b16 %v278
    %v532 = vunpack.c.l.b16 %v279
    %v533 = vunpack.c.h.b16 %v279
    %v534 = vunpack.c.l.b16 %v280
    %v535 = vunpack.c.h.b16 %v280
    %v536 = vunpack.c.l.b16 %v281
    %v537 = vunpack.c.h.b16 %v281
    %v538 = vunpack.c.l.b16 %v282
    %v539 = vunpack.c.h.b16 %v282
    %v540 = vunpack.c.l.b16 %v283
    %v541 = vunpack.c.h.b16 %v283
    %v542 = vunpack.c.l.b16 %v284
    %v543 = vunpack.c.h.b16 %v284
    %v544 = vunpack.c.l.b16 %v285
    %v545 = vunpack.c.h.b16 %v285
    %v546 = vunpack.c.l.b16 %v286
    %v547 = vunpack.c.h.b16 %v286
    %v548 = vunpack.c.l.b16 %v287
    %v549 = vunpack.c.h.b16 %v287
    %v550 = vunpack.c.l.b16 %v288
    %v551 = vunpack.c.h.b16 %v288
    %v552 = vunpack.c.l.b16 %v289
    %v553 = vunpack.c.h.b16 %v289
    %v554 = vunpack.c.l.b16 %v290
    %v555 = vunpack.c.h.b16 %v290
    %v556 = vunpack.c.l.b16 %v291
    %v557 = vunpack.c.h.b16 %v291
    %v558 = vunpack.c.l.b16 %v292
    %v559 = vunpack.c.h.b16 %v292
    %v560 = vunpack.c.l.b16 %v293
    %v561 = vunpack.c.h.b16 %v293
    %v562 = vunpack.c.l.b16 %v294
    %v563 = vunpack.c.h.b16 %v294
    %v564 = vunpack.c.l.b16 %v295
    %v565 = vunpack.c.h.b16 %v295
    %v566 = vunpack.c.l.b16 %v296
    %v567 = vunpack.c.h.b16 %v296
    %v568 = vunpack.c.l.b16 %v297
    %v569 = vunpack.c.h.b16 %v297
    %v570 = vunpack.c.l.b16 %v298
    %v571 = vunpack.c.h.b16 %v298
    %v572 = vunpack.c.l.b16 %v299
    %v573 = vunpack.c.h.b16 %v299
    %v574 = vunpack.c.l.b16 %v300
    %v575 = vunpack.c.h.b16 %v300
    %v576 = vunpack.c.l.b16 %v301
    %v577 = vunpack.c.h.b16 %v301
    %v578 = vunpack.c.l.b16 %v302
    %v579 = vunpack.c.h.b16 %v302
    %v580 = vunpack.c.l.b16 %v303
    %v581 = vunpack.c.h.b16 %v303
    %v582 = vunpack.c.l.b16 %v304
    %v583 = vunpack.c.h.b16 %v304
    %v584 = vunpack.c.l.b16 %v305
    %v585 = vunpack.c.h.b16 %v305
    %v586 = vunpack.c.l.b16 %v306
    %v587 = vunpack.c.h.b16 %v306
    %v588 = vunpack.c.l.b16 %v307
    %v589 = vunpack.c.h.b16 %v307
    %v590 = vunpack.c.l.b16 %v308
    %v591 = vunpack.c.h.b16 %v308
    %v592 = vunpack.c.l.b16 %v309
    %v593 = vunpack.c.h.b16 %v309
    %v594 = vunpack.c.l.b16 %v310
    %v595 = vunpack.c.h.b16 %v310
    %v596 = vunpack.c.l.b16 %v311
    %v597 = vunpack.c.h.b16 %v311
    %v598 = vunpack.c.l.b16 %v312
    %v599 = vunpack.c.h.b16 %v312
    %v600 = vunpack.c.l.b16 %v313
    %v601 = vunpack.c.h.b16 %v313
    %v602 = vunpack.c.l.b16 %v314
    %v603 = vunpack.c.h.b16 %v314
    %v604 = vunpack.c.l.b16 %v315
    %v605 = vunpack.c.h.b16 %v315
    %v606 = vunpack.c.l.b16 %v316
    %v607 = vunpack.c.h.b16 %v316
    %v608 = vunpack.c.l.b16 %v317
    %v609 = vunpack.c.h.b16 %v317
    %v610 = vunpack.c.l.b16 %v318
    %v611 = vunpack.c.h.b16 %v318
    %v612 = vunpack.c.l.b16 %v319
    %v613 = vunpack.c.h.b16 %v319
    %v614 = vunpack.c.l.b16 %v320
    %v615 = vunpack.c.h.b16 %v320
    %v616 = vunpack.c.l.b16 %v321
    %v617 = vunpack.c.h.b16 %v321
    %v618 = vunpack.c.l.b16 %v322
    %v619 = vunpack.c.h.b16 %v322
    %v620 = vunpack.c.l.b16 %v323
    %v621 = vunpack.c.h.b16 %v323
    %v622 = vunpack.c.l.b16 %v324
    %v623 = vunpack.c.h.b16 %v324
    %v624 = vunpack.c.l.b16 %v325
    %v625 = vunpack.c.h.b16 %v325
    %v626 = vpack.c.b16 %v432, %v430
    %v627 = vpack.c.b16 %v433, %v431
    %v628 = vpack.c.b16 %v436, %v434
    %v629 = vpack.c.b16 %v437, %v435
    %v630 = vpack.c.b16 %v440, %v438
    %v631 = vpack.c.b16 %v441, %v439
    %v632 = vpack.c.b16 %v444, %v442
    %v633 = vpack.c.b16 %v445, %v443
    %v634 = vpack.c.b16 %v448, %v446
    %v635 = vpack.c.b16 %v449, %v447
    %v636 = vpack.c.b16 %v452, %v450
    %v637 = vpack.c.b16 %v453, %v451
    %v638 = vpack.c.b16 %v456, %v454
    %v639 = vpack.c.b16 %v457, %v455
    %v640 = vpack.c.b16 %v460, %v458
    %v641 = vpack.c.b16 %v461, %v459
    %v642 = vpack.c.b16 %v464, %v462
    %v643 = vpack.c.b16 %v465, %v463
    %v644 = vpack.c.b16 %v468, %v466
    %v645 = vpack.c.b16 %v469, %v467
    %v646 = vpack.c.b16 %v472, %v470
    %v647 = vpack.c.b16 %v473, %v471
    %v648 = vpack.c.b16 %v476, %v474
    %v649 = vpack.c.b16 %v477, %v475
    %v650 = vpack.c.b16 %v480, %v478
    %v651 = vpack.c.b16 %v481, %v479
    %v652 = vpack.c.b16 %v484, %v482
    %v653 = vpack.c.b16 %v485, %v483
    %v654 = vpack.c.b16 %v488, %v486
    %v655 = vpack.c.b16 %v489, %v487
    %v656 = vpack.c.b16 %v492, %v490
    %v657 = vpack.c.b16 %v493, %v491
    %v658 = vpack.c.b16 %v496, %v494
    %v659 = vpack.c.b16 %v497, %v495
    %v660 = vpack.c.b16 %v500, %v498
    %v661 = vpack.c.b16 %v501, %v499
    %v662 = vpack.c.b16 %v504, %v502
    %v663 = vpack.c.b16 %v505, %v503
    %v664 = vpack.c.b16 %v508, %v506
    %v665 = vpack.c.b16 %v509, %v507
    %v666 = vpack.c.b16 %v512, %v510
    %v667 = vpack.c.b16 %v513, %v511
    %v668 = vpack.c.b16 %v516, %v514
    %v669 = vpack.c.b16 %v517, %v515
    %v670 = vpack.c.b16 %v520, %v518
    %v671 = vpack.c.b16 %v521, %v519
    %v672 = vpack.c.b16 %v524, %v522
    %v673 = vpack.c.b16 %v525, %v523
    %v674 = vpack.c.b16 %v528, %v526
    %v675 = vpack.c.b16 %v529, %v527
    %v676 = vpack.c.b16 %v532, %v530
    %v677 = vpack.c.b16 %v533, %v531
    %v678 = vpack.c.b16 %v536, %v534
    %v679 = vpack.c.b16 %v537, %v535
    %v680 = vpack.c.b16 %v540, %v538
    %v681 = vpack.c.b16 %v541, %v539
    %v682 = vpack.c.b16 %v544, %v542
    %v683 = vpack.c.b16 %v545, %v543
    %v684 = vpack.c.b16 %v548, %v546
    %v685 = vpack.c.b16 %v549, %v547
    %v686 = vpack.c.b16 %v552, %v550
    %v687 = vpack.c.b16 %v553, %v551
    %v688 = vpack.c.b16 %v556, %v554
    %v689 = vpack.c.b16 %v557, %v555
    %v690 = vpack.c.b16 %v560, %v558
    %v691 = vpack.c.b16 %v561, %v559
    %v692 = vpack.c.b16 %v564, %v562
    %v693 = vpack.c.b16 %v565, %v563
    %v694 = vpack.c.b16 %v568, %v566
    %v695 = vpack.c.b16 %v569, %v567
    %v696 = vpack.c.b16 %v572, %v570
    %v697 = vpack.c.b16 %v573, %v571
    %v698 = vpack.c.b16 %v576, %v574
    %v699 = vpack.c.b16 %v577, %v575
    %v700 = vpack.c.b16 %v580, %v578
    %v701 = vpack.c.b16 %v581, %v579
    %v702 = vpack.c.b16 %v584, %v582
    %v703 = vpack.c.b16 %v585, %v583
    %v704 = vpack.c.b16 %v588, %v586
    %v705 = vpack.c.b16 %v589, %v587
    %v706 = vpack.c.b16 %v592, %v590
    %v707 = vpack.c.b16 %v593, %v591
    %v708 = vpack.c.b16 %v596, %v594
    %v709 = vpack.c.b16 %v597, %v595
    %v710 = vpack.c.b16 %v600, %v598
    %v711 = vpack.c.b16 %v601, %v599
    %v712 = vpack.c.b16 %v604, %v602
    %v713 = vpack.c.b16 %v605, %v603
    %v714 = vpack.c.b16 %v608, %v606
    %v715 = vpack.c.b16 %v609, %v607
    %v716 = vpack.c.b16 %v612, %v610
    %v717 = vpack.c.b16 %v613, %v611
    %v718 = vpack.c.b16 %v616, %v614
    %v719 = vpack.c.b16 %v617, %v615
    %v720 = vpack.c.b16 %v620, %v618
    %v721 = vpack.c.b16 %v621, %v619
    %v722 = vpack.c.b16 %v624, %v622
    %v723 = vpack.c.b16 %v625, %v623
    %vm822 = vcmask 130048
    %v824 = vsel %vm822, %v178, 0
    %v827 = vsel %vm822, %v185, 0
    %v830 = vsel %vm822, %v192, 0
    %v833 = vsel %vm822, %v199, 0
    %v836 = vsel %vm822, %v206, 0
    %v839 = vsel %vm822, %v213, 0
    %v842 = vsel %vm822, %v220, 0
    %v845 = vsel %vm822, %v227, 0
    %847 = vmatpush.bf16.msra.mxu0 %v640
    %848 = vmatpush.bf16.msra.mxu0 %v638
    %849 = vmatpush.bf16.msra.mxu0 %v636
    %850 = vmatpush.bf16.msra.mxu0 %v634
    %851 = vmatpush.bf16.msra.mxu0 %v632
    %852 = vmatpush.bf16.msra.mxu0 %v630
    %853 = vmatpush.bf16.msra.mxu0 %v628
    %854 = vmatpush.bf16.msra.mxu0 %v626
    %855 = vmatmul.bf16.gmra.mxu0 %v172
    %v856 = vpop.f32.mrf.mxu0
    %v857 = vadd.f32 %v328, %v856
    %v858 = vpop.f32.mrf.mxu0
    %v859 = vadd.f32 %v328, %v858
    %860 = vmatmul.bf16.gmra.mxu0 %v179
    %v861 = vpop.f32.mrf.mxu0
    %v862 = vadd.f32 %v328, %v861
    %v863 = vpop.f32.mrf.mxu0
    %v864 = vadd.f32 %v328, %v863
    %865 = vmatmul.bf16.gmra.mxu0 %v186
    %v866 = vpop.f32.mrf.mxu0
    %v867 = vadd.f32 %v328, %v866
    %v868 = vpop.f32.mrf.mxu0
    %v869 = vadd.f32 %v328, %v868
    %870 = vmatmul.bf16.gmra.mxu0 %v193
    %v871 = vpop.f32.mrf.mxu0
    %v872 = vadd.f32 %v328, %v871
    %v873 = vpop.f32.mrf.mxu0
    %v874 = vadd.f32 %v328, %v873
    %875 = vmatmul.bf16.gmra.mxu0 %v200
    %v876 = vpop.f32.mrf.mxu0
    %v877 = vadd.f32 %v328, %v876
    %v878 = vpop.f32.mrf.mxu0
    %v879 = vadd.f32 %v328, %v878
    %880 = vmatmul.bf16.gmra.mxu0 %v207
    %v881 = vpop.f32.mrf.mxu0
    %v882 = vadd.f32 %v328, %v881
    %v883 = vpop.f32.mrf.mxu0
    %v884 = vadd.f32 %v328, %v883
    %885 = vmatmul.bf16.gmra.mxu0 %v214
    %v886 = vpop.f32.mrf.mxu0
    %v887 = vadd.f32 %v328, %v886
    %v888 = vpop.f32.mrf.mxu0
    %v889 = vadd.f32 %v328, %v888
    %890 = vmatmul.bf16.gmra.mxu0 %v221
    %v891 = vpop.f32.mrf.mxu0
    %v892 = vadd.f32 %v328, %v891
    %v893 = vpop.f32.mrf.mxu0
    %v894 = vadd.f32 %v328, %v893
    %895 = vdwg.mxu0
    %896 = vmatpush.bf16.msra.mxu0 %v656
    %897 = vmatpush.bf16.msra.mxu0 %v654
    %898 = vmatpush.bf16.msra.mxu0 %v652
    %899 = vmatpush.bf16.msra.mxu0 %v650
    %900 = vmatpush.bf16.msra.mxu0 %v648
    %901 = vmatpush.bf16.msra.mxu0 %v646
    %902 = vmatpush.bf16.msra.mxu0 %v644
    %903 = vmatpush.bf16.msra.mxu0 %v642
    %904 = vmatmul.bf16.gmra.mxu0 %v173
    %v905 = vpop.f32.mrf.mxu0
    %v906 = vadd.f32 %v857, %v905
    %v907 = vpop.f32.mrf.mxu0
    %v908 = vadd.f32 %v859, %v907
    %909 = vmatmul.bf16.gmra.mxu0 %v180
    %v910 = vpop.f32.mrf.mxu0
    %v911 = vadd.f32 %v862, %v910
    %v912 = vpop.f32.mrf.mxu0
    %v913 = vadd.f32 %v864, %v912
    %914 = vmatmul.bf16.gmra.mxu0 %v187
    %v915 = vpop.f32.mrf.mxu0
    %v916 = vadd.f32 %v867, %v915
    %v917 = vpop.f32.mrf.mxu0
    %v918 = vadd.f32 %v869, %v917
    %919 = vmatmul.bf16.gmra.mxu0 %v194
    %v920 = vpop.f32.mrf.mxu0
    %v921 = vadd.f32 %v872, %v920
    %v922 = vpop.f32.mrf.mxu0
    %v923 = vadd.f32 %v874, %v922
    %924 = vmatmul.bf16.gmra.mxu0 %v201
    %v925 = vpop.f32.mrf.mxu0
    %v926 = vadd.f32 %v877, %v925
    %v927 = vpop.f32.mrf.mxu0
    %v928 = vadd.f32 %v879, %v927
    %929 = vmatmul.bf16.gmra.mxu0 %v208
    %v930 = vpop.f32.mrf.mxu0
    %v931 = vadd.f32 %v882, %v930
    %v932 = vpop.f32.mrf.mxu0
    %v933 = vadd.f32 %v884, %v932
    %934 = vmatmul.bf16.gmra.mxu0 %v215
    %v935 = vpop.f32.mrf.mxu0
    %v936 = vadd.f32 %v887, %v935
    %v937 = vpop.f32.mrf.mxu0
    %v938 = vadd.f32 %v889, %v937
    %939 = vmatmul.bf16.gmra.mxu0 %v222
    %v940 = vpop.f32.mrf.mxu0
    %v941 = vadd.f32 %v892, %v940
    %v942 = vpop.f32.mrf.mxu0
    %v943 = vadd.f32 %v894, %v942
    %944 = vdwg.mxu0
    %945 = vmatpush.bf16.msra.mxu0 %v672
    %946 = vmatpush.bf16.msra.mxu0 %v670
    %947 = vmatpush.bf16.msra.mxu0 %v668
    %948 = vmatpush.bf16.msra.mxu0 %v666
    %949 = vmatpush.bf16.msra.mxu0 %v664
    %950 = vmatpush.bf16.msra.mxu0 %v662
    %951 = vmatpush.bf16.msra.mxu0 %v660
    %952 = vmatpush.bf16.msra.mxu0 %v658
    %953 = vmatmul.bf16.gmra.mxu0 %v174
    %v954 = vpop.f32.mrf.mxu0
    %v955 = vadd.f32 %v906, %v954
    %v956 = vpop.f32.mrf.mxu0
    %v957 = vadd.f32 %v908, %v956
    %958 = vmatmul.bf16.gmra.mxu0 %v181
    %v959 = vpop.f32.mrf.mxu0
    %v960 = vadd.f32 %v911, %v959
    %v961 = vpop.f32.mrf.mxu0
    %v962 = vadd.f32 %v913, %v961
    %963 = vmatmul.bf16.gmra.mxu0 %v188
    %v964 = vpop.f32.mrf.mxu0
    %v965 = vadd.f32 %v916, %v964
    %v966 = vpop.f32.mrf.mxu0
    %v967 = vadd.f32 %v918, %v966
    %968 = vmatmul.bf16.gmra.mxu0 %v195
    %v969 = vpop.f32.mrf.mxu0
    %v970 = vadd.f32 %v921, %v969
    %v971 = vpop.f32.mrf.mxu0
    %v972 = vadd.f32 %v923, %v971
    %973 = vmatmul.bf16.gmra.mxu0 %v202
    %v974 = vpop.f32.mrf.mxu0
    %v975 = vadd.f32 %v926, %v974
    %v976 = vpop.f32.mrf.mxu0
    %v977 = vadd.f32 %v928, %v976
    %978 = vmatmul.bf16.gmra.mxu0 %v209
    %v979 = vpop.f32.mrf.mxu0
    %v980 = vadd.f32 %v931, %v979
    %v981 = vpop.f32.mrf.mxu0
    %v982 = vadd.f32 %v933, %v981
    %983 = vmatmul.bf16.gmra.mxu0 %v216
    %v984 = vpop.f32.mrf.mxu0
    %v985 = vadd.f32 %v936, %v984
    %v986 = vpop.f32.mrf.mxu0
    %v987 = vadd.f32 %v938, %v986
    %988 = vmatmul.bf16.gmra.mxu0 %v223
    %v989 = vpop.f32.mrf.mxu0
    %v990 = vadd.f32 %v941, %v989
    %v991 = vpop.f32.mrf.mxu0
    %v992 = vadd.f32 %v943, %v991
    %993 = vdwg.mxu0
    %994 = vmatpush.bf16.msra.mxu0 %v688
    %995 = vmatpush.bf16.msra.mxu0 %v686
    %996 = vmatpush.bf16.msra.mxu0 %v684
    %997 = vmatpush.bf16.msra.mxu0 %v682
    %998 = vmatpush.bf16.msra.mxu0 %v680
    %999 = vmatpush.bf16.msra.mxu0 %v678
    %1000 = vmatpush.bf16.msra.mxu0 %v676
    %1001 = vmatpush.bf16.msra.mxu0 %v674
    %1002 = vmatmul.bf16.gmra.mxu0 %v175
    %v1003 = vpop.f32.mrf.mxu0
    %v1004 = vadd.f32 %v955, %v1003
    %v1005 = vpop.f32.mrf.mxu0
    %v1006 = vadd.f32 %v957, %v1005
    %1007 = vmatmul.bf16.gmra.mxu0 %v182
    %v1008 = vpop.f32.mrf.mxu0
    %v1009 = vadd.f32 %v960, %v1008
    %v1010 = vpop.f32.mrf.mxu0
    %v1011 = vadd.f32 %v962, %v1010
    %1012 = vmatmul.bf16.gmra.mxu0 %v189
    %v1013 = vpop.f32.mrf.mxu0
    %v1014 = vadd.f32 %v965, %v1013
    %v1015 = vpop.f32.mrf.mxu0
    %v1016 = vadd.f32 %v967, %v1015
    %1017 = vmatmul.bf16.gmra.mxu0 %v196
    %v1018 = vpop.f32.mrf.mxu0
    %v1019 = vadd.f32 %v970, %v1018
    %v1020 = vpop.f32.mrf.mxu0
    %v1021 = vadd.f32 %v972, %v1020
    %1022 = vmatmul.bf16.gmra.mxu0 %v203
    %v1023 = vpop.f32.mrf.mxu0
    %v1024 = vadd.f32 %v975, %v1023
    %v1025 = vpop.f32.mrf.mxu0
    %v1026 = vadd.f32 %v977, %v1025
    %1027 = vmatmul.bf16.gmra.mxu0 %v210
    %v1028 = vpop.f32.mrf.mxu0
    %v1029 = vadd.f32 %v980, %v1028
    %v1030 = vpop.f32.mrf.mxu0
    %v1031 = vadd.f32 %v982, %v1030
    %1032 = vmatmul.bf16.gmra.mxu0 %v217
    %v1033 = vpop.f32.mrf.mxu0
    %v1034 = vadd.f32 %v985, %v1033
    %v1035 = vpop.f32.mrf.mxu0
    %v1036 = vadd.f32 %v987, %v1035
    %1037 = vmatmul.bf16.gmra.mxu0 %v224
    %v1038 = vpop.f32.mrf.mxu0
    %v1039 = vadd.f32 %v990, %v1038
    %v1040 = vpop.f32.mrf.mxu0
    %v1041 = vadd.f32 %v992, %v1040
    %1042 = vdwg.mxu0
    %1043 = vmatpush.bf16.msra.mxu0 %v704
    %1044 = vmatpush.bf16.msra.mxu0 %v702
    %1045 = vmatpush.bf16.msra.mxu0 %v700
    %1046 = vmatpush.bf16.msra.mxu0 %v698
    %1047 = vmatpush.bf16.msra.mxu0 %v696
    %1048 = vmatpush.bf16.msra.mxu0 %v694
    %1049 = vmatpush.bf16.msra.mxu0 %v692
    %1050 = vmatpush.bf16.msra.mxu0 %v690
    %1051 = vmatmul.bf16.gmra.mxu0 %v176
    %v1052 = vpop.f32.mrf.mxu0
    %v1053 = vadd.f32 %v1004, %v1052
    %v1054 = vpop.f32.mrf.mxu0
    %v1055 = vadd.f32 %v1006, %v1054
    %1056 = vmatmul.bf16.gmra.mxu0 %v183
    %v1057 = vpop.f32.mrf.mxu0
    %v1058 = vadd.f32 %v1009, %v1057
    %v1059 = vpop.f32.mrf.mxu0
    %v1060 = vadd.f32 %v1011, %v1059
    %1061 = vmatmul.bf16.gmra.mxu0 %v190
    %v1062 = vpop.f32.mrf.mxu0
    %v1063 = vadd.f32 %v1014, %v1062
    %v1064 = vpop.f32.mrf.mxu0
    %v1065 = vadd.f32 %v1016, %v1064
    %1066 = vmatmul.bf16.gmra.mxu0 %v197
    %v1067 = vpop.f32.mrf.mxu0
    %v1068 = vadd.f32 %v1019, %v1067
    %v1069 = vpop.f32.mrf.mxu0
    %v1070 = vadd.f32 %v1021, %v1069
    %1071 = vmatmul.bf16.gmra.mxu0 %v204
    %v1072 = vpop.f32.mrf.mxu0
    %v1073 = vadd.f32 %v1024, %v1072
    %v1074 = vpop.f32.mrf.mxu0
    %v1075 = vadd.f32 %v1026, %v1074
    %1076 = vmatmul.bf16.gmra.mxu0 %v211
    %v1077 = vpop.f32.mrf.mxu0
    %v1078 = vadd.f32 %v1029, %v1077
    %v1079 = vpop.f32.mrf.mxu0
    %v1080 = vadd.f32 %v1031, %v1079
    %1081 = vmatmul.bf16.gmra.mxu0 %v218
    %v1082 = vpop.f32.mrf.mxu0
    %v1083 = vadd.f32 %v1034, %v1082
    %v1084 = vpop.f32.mrf.mxu0
    %v1085 = vadd.f32 %v1036, %v1084
    %1086 = vmatmul.bf16.gmra.mxu0 %v225
    %v1087 = vpop.f32.mrf.mxu0
    %v1088 = vadd.f32 %v1039, %v1087
    %v1089 = vpop.f32.mrf.mxu0
    %v1090 = vadd.f32 %v1041, %v1089
    %1091 = vdwg.mxu0
    %1092 = vmatpush.bf16.msra.mxu0 %v720
    %1093 = vmatpush.bf16.msra.mxu0 %v718
    %1094 = vmatpush.bf16.msra.mxu0 %v716
    %1095 = vmatpush.bf16.msra.mxu0 %v714
    %1096 = vmatpush.bf16.msra.mxu0 %v712
    %1097 = vmatpush.bf16.msra.mxu0 %v710
    %1098 = vmatpush.bf16.msra.mxu0 %v708
    %1099 = vmatpush.bf16.msra.mxu0 %v706
    %1100 = vmatmul.bf16.gmra.mxu0 %v177
    %v1101 = vpop.f32.mrf.mxu0
    %v1102 = vadd.f32 %v1053, %v1101
    %v1103 = vpop.f32.mrf.mxu0
    %v1104 = vadd.f32 %v1055, %v1103
    %1105 = vmatmul.bf16.gmra.mxu0 %v184
    %v1106 = vpop.f32.mrf.mxu0
    %v1107 = vadd.f32 %v1058, %v1106
    %v1108 = vpop.f32.mrf.mxu0
    %v1109 = vadd.f32 %v1060, %v1108
    %1110 = vmatmul.bf16.gmra.mxu0 %v191
    %v1111 = vpop.f32.mrf.mxu0
    %v1112 = vadd.f32 %v1063, %v1111
    %v1113 = vpop.f32.mrf.mxu0
    %v1114 = vadd.f32 %v1065, %v1113
    %1115 = vmatmul.bf16.gmra.mxu0 %v198
    %v1116 = vpop.f32.mrf.mxu0
    %v1117 = vadd.f32 %v1068, %v1116
    %v1118 = vpop.f32.mrf.mxu0
    %v1119 = vadd.f32 %v1070, %v1118
    %1120 = vmatmul.bf16.gmra.mxu0 %v205
    %v1121 = vpop.f32.mrf.mxu0
    %v1122 = vadd.f32 %v1073, %v1121
    %v1123 = vpop.f32.mrf.mxu0
    %v1124 = vadd.f32 %v1075, %v1123
    %1125 = vmatmul.bf16.gmra.mxu0 %v212
    %v1126 = vpop.f32.mrf.mxu0
    %v1127 = vadd.f32 %v1078, %v1126
    %v1128 = vpop.f32.mrf.mxu0
    %v1129 = vadd.f32 %v1080, %v1128
    %1130 = vmatmul.bf16.gmra.mxu0 %v219
    %v1131 = vpop.f32.mrf.mxu0
    %v1132 = vadd.f32 %v1083, %v1131
    %v1133 = vpop.f32.mrf.mxu0
    %v1134 = vadd.f32 %v1085, %v1133
    %1135 = vmatmul.bf16.gmra.mxu0 %v226
    %v1136 = vpop.f32.mrf.mxu0
    %v1137 = vadd.f32 %v1088, %v1136
    %v1138 = vpop.f32.mrf.mxu0
    %v1139 = vadd.f32 %v1090, %v1138
    %1140 = vdwg.mxu0
    %1141 = vmatpush.bf16.msra.mxu0 0
    %1142 = vmatpush.bf16.msra.mxu0 0
    %1143 = vmatpush.bf16.msra.mxu0 0
    %1144 = vmatpush.bf16.msra.mxu0 0
    %1145 = vmatpush.bf16.msra.mxu0 0
    %1146 = vmatpush.bf16.msra.mxu0 0
    %1147 = vmatpush.bf16.msra.mxu0 0
    %1148 = vmatpush.bf16.msra.mxu0 %v722
    %1149 = vmatmul.bf16.gmra.mxu0 %v824
    %v1150 = vpop.f32.mrf.mxu0
    %v1151 = vadd.f32 %v1102, %v1150
    %v1152 = vpop.f32.mrf.mxu0
    %v1153 = vadd.f32 %v1104, %v1152
    %1154 = vmatmul.bf16.gmra.mxu0 %v827
    %v1155 = vpop.f32.mrf.mxu0
    %v1156 = vadd.f32 %v1107, %v1155
    %v1157 = vpop.f32.mrf.mxu0
    %v1158 = vadd.f32 %v1109, %v1157
    %1159 = vmatmul.bf16.gmra.mxu0 %v830
    %v1160 = vpop.f32.mrf.mxu0
    %v1161 = vadd.f32 %v1112, %v1160
    %v1162 = vpop.f32.mrf.mxu0
    %v1163 = vadd.f32 %v1114, %v1162
    %1164 = vmatmul.bf16.gmra.mxu0 %v833
    %v1165 = vpop.f32.mrf.mxu0
    %v1166 = vadd.f32 %v1117, %v1165
    %v1167 = vpop.f32.mrf.mxu0
    %v1168 = vadd.f32 %v1119, %v1167
    %1169 = vmatmul.bf16.gmra.mxu0 %v836
    %v1170 = vpop.f32.mrf.mxu0
    %v1171 = vadd.f32 %v1122, %v1170
    %v1172 = vpop.f32.mrf.mxu0
    %v1173 = vadd.f32 %v1124, %v1172
    %1174 = vmatmul.bf16.gmra.mxu0 %v839
    %v1175 = vpop.f32.mrf.mxu0
    %v1176 = vadd.f32 %v1127, %v1175
    %v1177 = vpop.f32.mrf.mxu0
    %v1178 = vadd.f32 %v1129, %v1177
    %1179 = vmatmul.bf16.gmra.mxu0 %v842
    %v1180 = vpop.f32.mrf.mxu0
    %v1181 = vadd.f32 %v1132, %v1180
    %v1182 = vpop.f32.mrf.mxu0
    %v1183 = vadd.f32 %v1134, %v1182
    %1184 = vmatmul.bf16.gmra.mxu0 %v845
    %v1185 = vpop.f32.mrf.mxu0
    %v1186 = vadd.f32 %v1137, %v1185
    %v1187 = vpop.f32.mrf.mxu0
    %v1188 = vadd.f32 %v1139, %v1187
    %1189 = vdwg.mxu0
    %1190 = vmatpush.bf16.msra.mxu0 %v641
    %1191 = vmatpush.bf16.msra.mxu0 %v639
    %1192 = vmatpush.bf16.msra.mxu0 %v637
    %1193 = vmatpush.bf16.msra.mxu0 %v635
    %1194 = vmatpush.bf16.msra.mxu0 %v633
    %1195 = vmatpush.bf16.msra.mxu0 %v631
    %1196 = vmatpush.bf16.msra.mxu0 %v629
    %1197 = vmatpush.bf16.msra.mxu0 %v627
    %1198 = vmatmul.bf16.gmra.mxu0 %v172
    %v1199 = vpop.f32.mrf.mxu0
    %v1200 = vadd.f32 %v329, %v1199
    %v1201 = vpop.f32.mrf.mxu0
    %v1202 = vadd.f32 %v329, %v1201
    %1203 = vmatmul.bf16.gmra.mxu0 %v179
    %v1204 = vpop.f32.mrf.mxu0
    %v1205 = vadd.f32 %v329, %v1204
    %v1206 = vpop.f32.mrf.mxu0
    %v1207 = vadd.f32 %v329, %v1206
    %1208 = vmatmul.bf16.gmra.mxu0 %v186
    %v1209 = vpop.f32.mrf.mxu0
    %v1210 = vadd.f32 %v329, %v1209
    %v1211 = vpop.f32.mrf.mxu0
    %v1212 = vadd.f32 %v329, %v1211
    %1213 = vmatmul.bf16.gmra.mxu0 %v193
    %v1214 = vpop.f32.mrf.mxu0
    %v1215 = vadd.f32 %v329, %v1214
    %v1216 = vpop.f32.mrf.mxu0
    %v1217 = vadd.f32 %v329, %v1216
    %1218 = vmatmul.bf16.gmra.mxu0 %v200
    %v1219 = vpop.f32.mrf.mxu0
    %v1220 = vadd.f32 %v329, %v1219
    %v1221 = vpop.f32.mrf.mxu0
    %v1222 = vadd.f32 %v329, %v1221
    %1223 = vmatmul.bf16.gmra.mxu0 %v207
    %v1224 = vpop.f32.mrf.mxu0
    %v1225 = vadd.f32 %v329, %v1224
    %v1226 = vpop.f32.mrf.mxu0
    %v1227 = vadd.f32 %v329, %v1226
    %1228 = vmatmul.bf16.gmra.mxu0 %v214
    %v1229 = vpop.f32.mrf.mxu0
    %v1230 = vadd.f32 %v329, %v1229
    %v1231 = vpop.f32.mrf.mxu0
    %v1232 = vadd.f32 %v329, %v1231
    %1233 = vmatmul.bf16.gmra.mxu0 %v221
    %v1234 = vpop.f32.mrf.mxu0
    %v1235 = vadd.f32 %v329, %v1234
    %v1236 = vpop.f32.mrf.mxu0
    %v1237 = vadd.f32 %v329, %v1236
    %1238 = vdwg.mxu0
    %1239 = vmatpush.bf16.msra.mxu0 %v657
    %1240 = vmatpush.bf16.msra.mxu0 %v655
    %1241 = vmatpush.bf16.msra.mxu0 %v653
    %1242 = vmatpush.bf16.msra.mxu0 %v651
    %1243 = vmatpush.bf16.msra.mxu0 %v649
    %1244 = vmatpush.bf16.msra.mxu0 %v647
    %1245 = vmatpush.bf16.msra.mxu0 %v645
    %1246 = vmatpush.bf16.msra.mxu0 %v643
    %1247 = vmatmul.bf16.gmra.mxu0 %v173
    %v1248 = vpop.f32.mrf.mxu0
    %v1249 = vadd.f32 %v1200, %v1248
    %v1250 = vpop.f32.mrf.mxu0
    %v1251 = vadd.f32 %v1202, %v1250
    %1252 = vmatmul.bf16.gmra.mxu0 %v180
    %v1253 = vpop.f32.mrf.mxu0
    %v1254 = vadd.f32 %v1205, %v1253
    %v1255 = vpop.f32.mrf.mxu0
    %v1256 = vadd.f32 %v1207, %v1255
    %1257 = vmatmul.bf16.gmra.mxu0 %v187
    %v1258 = vpop.f32.mrf.mxu0
    %v1259 = vadd.f32 %v1210, %v1258
    %v1260 = vpop.f32.mrf.mxu0
    %v1261 = vadd.f32 %v1212, %v1260
    %1262 = vmatmul.bf16.gmra.mxu0 %v194
    %v1263 = vpop.f32.mrf.mxu0
    %v1264 = vadd.f32 %v1215, %v1263
    %v1265 = vpop.f32.mrf.mxu0
    %v1266 = vadd.f32 %v1217, %v1265
    %1267 = vmatmul.bf16.gmra.mxu0 %v201
    %v1268 = vpop.f32.mrf.mxu0
    %v1269 = vadd.f32 %v1220, %v1268
    %v1270 = vpop.f32.mrf.mxu0
    %v1271 = vadd.f32 %v1222, %v1270
    %1272 = vmatmul.bf16.gmra.mxu0 %v208
    %v1273 = vpop.f32.mrf.mxu0
    %v1274 = vadd.f32 %v1225, %v1273
    %v1275 = vpop.f32.mrf.mxu0
    %v1276 = vadd.f32 %v1227, %v1275
    %1277 = vmatmul.bf16.gmra.mxu0 %v215
    %v1278 = vpop.f32.mrf.mxu0
    %v1279 = vadd.f32 %v1230, %v1278
    %v1280 = vpop.f32.mrf.mxu0
    %v1281 = vadd.f32 %v1232, %v1280
    %1282 = vmatmul.bf16.gmra.mxu0 %v222
    %v1283 = vpop.f32.mrf.mxu0
    %v1284 = vadd.f32 %v1235, %v1283
    %v1285 = vpop.f32.mrf.mxu0
    %v1286 = vadd.f32 %v1237, %v1285
    %1287 = vdwg.mxu0
    %1288 = vmatpush.bf16.msra.mxu0 %v673
    %1289 = vmatpush.bf16.msra.mxu0 %v671
    %1290 = vmatpush.bf16.msra.mxu0 %v669
    %1291 = vmatpush.bf16.msra.mxu0 %v667
    %1292 = vmatpush.bf16.msra.mxu0 %v665
    %1293 = vmatpush.bf16.msra.mxu0 %v663
    %1294 = vmatpush.bf16.msra.mxu0 %v661
    %1295 = vmatpush.bf16.msra.mxu0 %v659
    %1296 = vmatmul.bf16.gmra.mxu0 %v174
    %v1297 = vpop.f32.mrf.mxu0
    %v1298 = vadd.f32 %v1249, %v1297
    %v1299 = vpop.f32.mrf.mxu0
    %v1300 = vadd.f32 %v1251, %v1299
    %1301 = vmatmul.bf16.gmra.mxu0 %v181
    %v1302 = vpop.f32.mrf.mxu0
    %v1303 = vadd.f32 %v1254, %v1302
    %v1304 = vpop.f32.mrf.mxu0
    %v1305 = vadd.f32 %v1256, %v1304
    %1306 = vmatmul.bf16.gmra.mxu0 %v188
    %v1307 = vpop.f32.mrf.mxu0
    %v1308 = vadd.f32 %v1259, %v1307
    %v1309 = vpop.f32.mrf.mxu0
    %v1310 = vadd.f32 %v1261, %v1309
    %1311 = vmatmul.bf16.gmra.mxu0 %v195
    %v1312 = vpop.f32.mrf.mxu0
    %v1313 = vadd.f32 %v1264, %v1312
    %v1314 = vpop.f32.mrf.mxu0
    %v1315 = vadd.f32 %v1266, %v1314
    %1316 = vmatmul.bf16.gmra.mxu0 %v202
    %v1317 = vpop.f32.mrf.mxu0
    %v1318 = vadd.f32 %v1269, %v1317
    %v1319 = vpop.f32.mrf.mxu0
    %v1320 = vadd.f32 %v1271, %v1319
    %1321 = vmatmul.bf16.gmra.mxu0 %v209
    %v1322 = vpop.f32.mrf.mxu0
    %v1323 = vadd.f32 %v1274, %v1322
    %v1324 = vpop.f32.mrf.mxu0
    %v1325 = vadd.f32 %v1276, %v1324
    %1326 = vmatmul.bf16.gmra.mxu0 %v216
    %v1327 = vpop.f32.mrf.mxu0
    %v1328 = vadd.f32 %v1279, %v1327
    %v1329 = vpop.f32.mrf.mxu0
    %v1330 = vadd.f32 %v1281, %v1329
    %1331 = vmatmul.bf16.gmra.mxu0 %v223
    %v1332 = vpop.f32.mrf.mxu0
    %v1333 = vadd.f32 %v1284, %v1332
    %v1334 = vpop.f32.mrf.mxu0
    %v1335 = vadd.f32 %v1286, %v1334
    %1336 = vdwg.mxu0
    %1337 = vmatpush.bf16.msra.mxu0 %v689
    %1338 = vmatpush.bf16.msra.mxu0 %v687
    %1339 = vmatpush.bf16.msra.mxu0 %v685
    %1340 = vmatpush.bf16.msra.mxu0 %v683
    %1341 = vmatpush.bf16.msra.mxu0 %v681
    %1342 = vmatpush.bf16.msra.mxu0 %v679
    %1343 = vmatpush.bf16.msra.mxu0 %v677
    %1344 = vmatpush.bf16.msra.mxu0 %v675
    %1345 = vmatmul.bf16.gmra.mxu0 %v175
    %v1346 = vpop.f32.mrf.mxu0
    %v1347 = vadd.f32 %v1298, %v1346
    %v1348 = vpop.f32.mrf.mxu0
    %v1349 = vadd.f32 %v1300, %v1348
    %1350 = vmatmul.bf16.gmra.mxu0 %v182
    %v1351 = vpop.f32.mrf.mxu0
    %v1352 = vadd.f32 %v1303, %v1351
    %v1353 = vpop.f32.mrf.mxu0
    %v1354 = vadd.f32 %v1305, %v1353
    %1355 = vmatmul.bf16.gmra.mxu0 %v189
    %v1356 = vpop.f32.mrf.mxu0
    %v1357 = vadd.f32 %v1308, %v1356
    %v1358 = vpop.f32.mrf.mxu0
    %v1359 = vadd.f32 %v1310, %v1358
    %1360 = vmatmul.bf16.gmra.mxu0 %v196
    %v1361 = vpop.f32.mrf.mxu0
    %v1362 = vadd.f32 %v1313, %v1361
    %v1363 = vpop.f32.mrf.mxu0
    %v1364 = vadd.f32 %v1315, %v1363
    %1365 = vmatmul.bf16.gmra.mxu0 %v203
    %v1366 = vpop.f32.mrf.mxu0
    %v1367 = vadd.f32 %v1318, %v1366
    %v1368 = vpop.f32.mrf.mxu0
    %v1369 = vadd.f32 %v1320, %v1368
    %1370 = vmatmul.bf16.gmra.mxu0 %v210
    %v1371 = vpop.f32.mrf.mxu0
    %v1372 = vadd.f32 %v1323, %v1371
    %v1373 = vpop.f32.mrf.mxu0
    %v1374 = vadd.f32 %v1325, %v1373
    %1375 = vmatmul.bf16.gmra.mxu0 %v217
    %v1376 = vpop.f32.mrf.mxu0
    %v1377 = vadd.f32 %v1328, %v1376
    %v1378 = vpop.f32.mrf.mxu0
    %v1379 = vadd.f32 %v1330, %v1378
    %1380 = vmatmul.bf16.gmra.mxu0 %v224
    %v1381 = vpop.f32.mrf.mxu0
    %v1382 = vadd.f32 %v1333, %v1381
    %v1383 = vpop.f32.mrf.mxu0
    %v1384 = vadd.f32 %v1335, %v1383
    %1385 = vdwg.mxu0
    %1386 = vmatpush.bf16.msra.mxu0 %v705
    %1387 = vmatpush.bf16.msra.mxu0 %v703
    %1388 = vmatpush.bf16.msra.mxu0 %v701
    %1389 = vmatpush.bf16.msra.mxu0 %v699
    %1390 = vmatpush.bf16.msra.mxu0 %v697
    %1391 = vmatpush.bf16.msra.mxu0 %v695
    %1392 = vmatpush.bf16.msra.mxu0 %v693
    %1393 = vmatpush.bf16.msra.mxu0 %v691
    %1394 = vmatmul.bf16.gmra.mxu0 %v176
    %v1395 = vpop.f32.mrf.mxu0
    %v1396 = vadd.f32 %v1347, %v1395
    %v1397 = vpop.f32.mrf.mxu0
    %v1398 = vadd.f32 %v1349, %v1397
    %1399 = vmatmul.bf16.gmra.mxu0 %v183
    %v1400 = vpop.f32.mrf.mxu0
    %v1401 = vadd.f32 %v1352, %v1400
    %v1402 = vpop.f32.mrf.mxu0
    %v1403 = vadd.f32 %v1354, %v1402
    %1404 = vmatmul.bf16.gmra.mxu0 %v190
    %v1405 = vpop.f32.mrf.mxu0
    %v1406 = vadd.f32 %v1357, %v1405
    %v1407 = vpop.f32.mrf.mxu0
    %v1408 = vadd.f32 %v1359, %v1407
    %1409 = vmatmul.bf16.gmra.mxu0 %v197
    %v1410 = vpop.f32.mrf.mxu0
    %v1411 = vadd.f32 %v1362, %v1410
    %v1412 = vpop.f32.mrf.mxu0
    %v1413 = vadd.f32 %v1364, %v1412
    %1414 = vmatmul.bf16.gmra.mxu0 %v204
    %v1415 = vpop.f32.mrf.mxu0
    %v1416 = vadd.f32 %v1367, %v1415
    %v1417 = vpop.f32.mrf.mxu0
    %v1418 = vadd.f32 %v1369, %v1417
    %1419 = vmatmul.bf16.gmra.mxu0 %v211
    %v1420 = vpop.f32.mrf.mxu0
    %v1421 = vadd.f32 %v1372, %v1420
    %v1422 = vpop.f32.mrf.mxu0
    %v1423 = vadd.f32 %v1374, %v1422
    %1424 = vmatmul.bf16.gmra.mxu0 %v218
    %v1425 = vpop.f32.mrf.mxu0
    %v1426 = vadd.f32 %v1377, %v1425
    %v1427 = vpop.f32.mrf.mxu0
    %v1428 = vadd.f32 %v1379, %v1427
    %1429 = vmatmul.bf16.gmra.mxu0 %v225
    %v1430 = vpop.f32.mrf.mxu0
    %v1431 = vadd.f32 %v1382, %v1430
    %v1432 = vpop.f32.mrf.mxu0
    %v1433 = vadd.f32 %v1384, %v1432
    %1434 = vdwg.mxu0
    %1435 = vmatpush.bf16.msra.mxu0 %v721
    %1436 = vmatpush.bf16.msra.mxu0 %v719
    %1437 = vmatpush.bf16.msra.mxu0 %v717
    %1438 = vmatpush.bf16.msra.mxu0 %v715
    %1439 = vmatpush.bf16.msra.mxu0 %v713
    %1440 = vmatpush.bf16.msra.mxu0 %v711
    %1441 = vmatpush.bf16.msra.mxu0 %v709
    %1442 = vmatpush.bf16.msra.mxu0 %v707
    %1443 = vmatmul.bf16.gmra.mxu0 %v177
    %v1444 = vpop.f32.mrf.mxu0
    %v1445 = vadd.f32 %v1396, %v1444
    %v1446 = vpop.f32.mrf.mxu0
    %v1447 = vadd.f32 %v1398, %v1446
    %1448 = vmatmul.bf16.gmra.mxu0 %v184
    %v1449 = vpop.f32.mrf.mxu0
    %v1450 = vadd.f32 %v1401, %v1449
    %v1451 = vpop.f32.mrf.mxu0
    %v1452 = vadd.f32 %v1403, %v1451
    %1453 = vmatmul.bf16.gmra.mxu0 %v191
    %v1454 = vpop.f32.mrf.mxu0
    %v1455 = vadd.f32 %v1406, %v1454
    %v1456 = vpop.f32.mrf.mxu0
    %v1457 = vadd.f32 %v1408, %v1456
    %1458 = vmatmul.bf16.gmra.mxu0 %v198
    %v1459 = vpop.f32.mrf.mxu0
    %v1460 = vadd.f32 %v1411, %v1459
    %v1461 = vpop.f32.mrf.mxu0
    %v1462 = vadd.f32 %v1413, %v1461
    %1463 = vmatmul.bf16.gmra.mxu0 %v205
    %v1464 = vpop.f32.mrf.mxu0
    %v1465 = vadd.f32 %v1416, %v1464
    %v1466 = vpop.f32.mrf.mxu0
    %v1467 = vadd.f32 %v1418, %v1466
    %1468 = vmatmul.bf16.gmra.mxu0 %v212
    %v1469 = vpop.f32.mrf.mxu0
    %v1470 = vadd.f32 %v1421, %v1469
    %v1471 = vpop.f32.mrf.mxu0
    %v1472 = vadd.f32 %v1423, %v1471
    %1473 = vmatmul.bf16.gmra.mxu0 %v219
    %v1474 = vpop.f32.mrf.mxu0
    %v1475 = vadd.f32 %v1426, %v1474
    %v1476 = vpop.f32.mrf.mxu0
    %v1477 = vadd.f32 %v1428, %v1476
    %1478 = vmatmul.bf16.gmra.mxu0 %v226
    %v1479 = vpop.f32.mrf.mxu0
    %v1480 = vadd.f32 %v1431, %v1479
    %v1481 = vpop.f32.mrf.mxu0
    %v1482 = vadd.f32 %v1433, %v1481
    %1483 = vdwg.mxu0
    %1484 = vmatpush.bf16.msra.mxu0 0
    %1485 = vmatpush.bf16.msra.mxu0 0
    %1486 = vmatpush.bf16.msra.mxu0 0
    %1487 = vmatpush.bf16.msra.mxu0 0
    %1488 = vmatpush.bf16.msra.mxu0 0
    %1489 = vmatpush.bf16.msra.mxu0 0
    %1490 = vmatpush.bf16.msra.mxu0 0
    %1491 = vmatpush.bf16.msra.mxu0 %v723
    %1492 = vmatmul.bf16.gmra.mxu0 %v824
    %v1493 = vpop.f32.mrf.mxu0
    %v1494 = vadd.f32 %v1445, %v1493
    %v1495 = vpop.f32.mrf.mxu0
    %v1496 = vadd.f32 %v1447, %v1495
    %1497 = vmatmul.bf16.gmra.mxu0 %v827
    %v1498 = vpop.f32.mrf.mxu0
    %v1499 = vadd.f32 %v1450, %v1498
    %v1500 = vpop.f32.mrf.mxu0
    %v1501 = vadd.f32 %v1452, %v1500
    %1502 = vmatmul.bf16.gmra.mxu0 %v830
    %v1503 = vpop.f32.mrf.mxu0
    %v1504 = vadd.f32 %v1455, %v1503
    %v1505 = vpop.f32.mrf.mxu0
    %v1506 = vadd.f32 %v1457, %v1505
    %1507 = vmatmul.bf16.gmra.mxu0 %v833
    %v1508 = vpop.f32.mrf.mxu0
    %v1509 = vadd.f32 %v1460, %v1508
    %v1510 = vpop.f32.mrf.mxu0
    %v1511 = vadd.f32 %v1462, %v1510
    %1512 = vmatmul.bf16.gmra.mxu0 %v836
    %v1513 = vpop.f32.mrf.mxu0
    %v1514 = vadd.f32 %v1465, %v1513
    %v1515 = vpop.f32.mrf.mxu0
    %v1516 = vadd.f32 %v1467, %v1515
    %1517 = vmatmul.bf16.gmra.mxu0 %v839
    %v1518 = vpop.f32.mrf.mxu0
    %v1519 = vadd.f32 %v1470, %v1518
    %v1520 = vpop.f32.mrf.mxu0
    %v1521 = vadd.f32 %v1472, %v1520
    %1522 = vmatmul.bf16.gmra.mxu0 %v842
    %v1523 = vpop.f32.mrf.mxu0
    %v1524 = vadd.f32 %v1475, %v1523
    %v1525 = vpop.f32.mrf.mxu0
    %v1526 = vadd.f32 %v1477, %v1525
    %1527 = vmatmul.bf16.gmra.mxu0 %v845
    %v1528 = vpop.f32.mrf.mxu0
    %v1529 = vadd.f32 %v1480, %v1528
    %v1530 = vpop.f32.mrf.mxu0
    %v1531 = vadd.f32 %v1482, %v1530
    %1532 = vdwg.mxu0
    %v1533 = vmax.f32 %v1151, 0.0
    %v1534 = vmax.f32 %v1494, 0.0
    %v1535 = vmax.f32 %v1153, 0.0
    %v1536 = vmax.f32 %v1496, 0.0
    %v1537 = vmax.f32 %v1156, 0.0
    %v1538 = vmax.f32 %v1499, 0.0
    %v1539 = vmax.f32 %v1158, 0.0
    %v1540 = vmax.f32 %v1501, 0.0
    %v1541 = vmax.f32 %v1161, 0.0
    %v1542 = vmax.f32 %v1504, 0.0
    %v1543 = vmax.f32 %v1163, 0.0
    %v1544 = vmax.f32 %v1506, 0.0
    %v1545 = vmax.f32 %v1166, 0.0
    %v1546 = vmax.f32 %v1509, 0.0
    %v1547 = vmax.f32 %v1168, 0.0
    %v1548 = vmax.f32 %v1511, 0.0
    %v1549 = vmax.f32 %v1171, 0.0
    %v1550 = vmax.f32 %v1514, 0.0
    %v1551 = vmax.f32 %v1173, 0.0
    %v1552 = vmax.f32 %v1516, 0.0
    %v1553 = vmax.f32 %v1176, 0.0
    %v1554 = vmax.f32 %v1519, 0.0
    %v1555 = vmax.f32 %v1178, 0.0
    %v1556 = vmax.f32 %v1521, 0.0
    %v1557 = vmax.f32 %v1181, 0.0
    %v1558 = vmax.f32 %v1524, 0.0
    %v1559 = vmax.f32 %v1183, 0.0
    %v1560 = vmax.f32 %v1526, 0.0
    %v1561 = vmax.f32 %v1186, 0.0
    %v1562 = vmax.f32 %v1529, 0.0
    %v1563 = vmax.f32 %v1188, 0.0
    %v1564 = vmax.f32 %v1531, 0.0
    %v1565 = vpack.c.bf16 %v1535, %v1533
    %v1566 = vpack.c.bf16 %v1536, %v1534
    %v1567 = vpack.c.bf16 %v1539, %v1537
    %v1568 = vpack.c.bf16 %v1540, %v1538
    %v1569 = vpack.c.bf16 %v1543, %v1541
    %v1570 = vpack.c.bf16 %v1544, %v1542
    %v1571 = vpack.c.bf16 %v1547, %v1545
    %v1572 = vpack.c.bf16 %v1548, %v1546
    %v1573 = vpack.c.bf16 %v1551, %v1549
    %v1574 = vpack.c.bf16 %v1552, %v1550
    %v1575 = vpack.c.bf16 %v1555, %v1553
    %v1576 = vpack.c.bf16 %v1556, %v1554
    %v1577 = vpack.c.bf16 %v1559, %v1557
    %v1578 = vpack.c.bf16 %v1560, %v1558
    %v1579 = vpack.c.bf16 %v1563, %v1561
    %v1580 = vpack.c.bf16 %v1564, %v1562
    %v1581 = vld [vmem:[#allocation2] sm:$0xff]
    %v1582 = vld [vmem:[#allocation2 + $0x8] sm:$0xff]
    %v1583 = vld [vmem:[#allocation2 + $0x10] sm:$0xff]
    %v1584 = vld [vmem:[#allocation2 + $0x18] sm:$0xff]
    %v1585 = vld [vmem:[#allocation2 + $0x20] sm:$0xff]
    %v1586 = vld [vmem:[#allocation2 + $0x28] sm:$0xff]
    %v1587 = vld [vmem:[#allocation2 + $0x30] sm:$0xff]
    %v1588 = vld [vmem:[#allocation2 + $0x38] sm:$0xff]
    %v1589 = vld [vmem:[#allocation2 + $0x40] sm:$0xff]
    %v1590 = vld [vmem:[#allocation2 + $0x48] sm:$0xff]
    %v1591 = vld [vmem:[#allocation2 + $0x50] sm:$0xff]
    %v1592 = vld [vmem:[#allocation2 + $0x58] sm:$0xff]
    %v1593 = vld [vmem:[#allocation2 + $0x60] sm:$0xff]
    %v1594 = vld [vmem:[#allocation2 + $0x68] sm:$0xff]
    %v1595 = vld [vmem:[#allocation2 + $0x70] sm:$0xff]
    %v1596 = vld [vmem:[#allocation2 + $0x78] sm:$0xff]
    %v1597 = vld [vmem:[#allocation2 + $0x80] sm:$0xff]
    %v1598 = vld [vmem:[#allocation2 + $0x88] sm:$0xff]
    %v1599 = vld [vmem:[#allocation2 + $0x90] sm:$0xff]
    %v1600 = vld [vmem:[#allocation2 + $0x98] sm:$0xff]
    %v1601 = vld [vmem:[#allocation2 + $0xa0] sm:$0xff]
    %v1602 = vld [vmem:[#allocation2 + $0xa8] sm:$0xff]
    %v1603 = vld [vmem:[#allocation2 + $0xb0] sm:$0xff]
    %v1604 = vld [vmem:[#allocation2 + $0xb8] sm:$0xff]
    %v1605 = vld [vmem:[#allocation2 + $0xc0] sm:$0xff]
    %v1606 = vld [vmem:[#allocation2 + $0xc8] sm:$0xff]
    %v1607 = vld [vmem:[#allocation2 + $0xd0] sm:$0xff]
    %v1608 = vld [vmem:[#allocation2 + $0xd8] sm:$0xff]
    %v1609 = vld [vmem:[#allocation2 + $0xe0] sm:$0xff]
    %v1610 = vld [vmem:[#allocation2 + $0xe8] sm:$0xff]
    %v1611 = vld [vmem:[#allocation2 + $0xf0] sm:$0xff]
    %v1612 = vld [vmem:[#allocation2 + $0xf8] sm:$0xff]
    %v1613 = vld [vmem:[%s4] sm:$0x3]
    %v1615 = vperm.slane %v1613, 0
    %v1616 = vperm.slane %v1613, 1
    %v1651 = vunpack.c.l.b16 %v1581
    %v1652 = vunpack.c.h.b16 %v1581
    %v1653 = vunpack.c.l.b16 %v1582
    %v1654 = vunpack.c.h.b16 %v1582
    %v1655 = vunpack.c.l.b16 %v1583
    %v1656 = vunpack.c.h.b16 %v1583
    %v1657 = vunpack.c.l.b16 %v1584
    %v1658 = vunpack.c.h.b16 %v1584
    %v1659 = vunpack.c.l.b16 %v1585
    %v1660 = vunpack.c.h.b16 %v1585
    %v1661 = vunpack.c.l.b16 %v1586
    %v1662 = vunpack.c.h.b16 %v1586
    %v1663 = vunpack.c.l.b16 %v1587
    %v1664 = vunpack.c.h.b16 %v1587
    %v1665 = vunpack.c.l.b16 %v1588
    %v1666 = vunpack.c.h.b16 %v1588
    %v1667 = vunpack.c.l.b16 %v1589
    %v1668 = vunpack.c.h.b16 %v1589
    %v1669 = vunpack.c.l.b16 %v1590
    %v1670 = vunpack.c.h.b16 %v1590
    %v1671 = vunpack.c.l.b16 %v1591
    %v1672 = vunpack.c.h.b16 %v1591
    %v1673 = vunpack.c.l.b16 %v1592
    %v1674 = vunpack.c.h.b16 %v1592
    %v1675 = vunpack.c.l.b16 %v1593
    %v1676 = vunpack.c.h.b16 %v1593
    %v1677 = vunpack.c.l.b16 %v1594
    %v1678 = vunpack.c.h.b16 %v1594
    %v1679 = vunpack.c.l.b16 %v1595
    %v1680 = vunpack.c.h.b16 %v1595
    %v1681 = vunpack.c.l.b16 %v1596
    %v1682 = vunpack.c.h.b16 %v1596
    %v1683 = vunpack.c.l.b16 %v1597
    %v1684 = vunpack.c.h.b16 %v1597
    %v1685 = vunpack.c.l.b16 %v1598
    %v1686 = vunpack.c.h.b16 %v1598
    %v1687 = vunpack.c.l.b16 %v1599
    %v1688 = vunpack.c.h.b16 %v1599
    %v1689 = vunpack.c.l.b16 %v1600
    %v1690 = vunpack.c.h.b16 %v1600
    %v1691 = vunpack.c.l.b16 %v1601
    %v1692 = vunpack.c.h.b16 %v1601
    %v1693 = vunpack.c.l.b16 %v1602
    %v1694 = vunpack.c.h.b16 %v1602
    %v1695 = vunpack.c.l.b16 %v1603
    %v1696 = vunpack.c.h.b16 %v1603
    %v1697 = vunpack.c.l.b16 %v1604
    %v1698 = vunpack.c.h.b16 %v1604
    %v1699 = vunpack.c.l.b16 %v1605
    %v1700 = vunpack.c.h.b16 %v1605
    %v1701 = vunpack.c.l.b16 %v1606
    %v1702 = vunpack.c.h.b16 %v1606
    %v1703 = vunpack.c.l.b16 %v1607
    %v1704 = vunpack.c.h.b16 %v1607
    %v1705 = vunpack.c.l.b16 %v1608
    %v1706 = vunpack.c.h.b16 %v1608
    %v1707 = vunpack.c.l.b16 %v1609
    %v1708 = vunpack.c.h.b16 %v1609
    %v1709 = vunpack.c.l.b16 %v1610
    %v1710 = vunpack.c.h.b16 %v1610
    %v1711 = vunpack.c.l.b16 %v1611
    %v1712 = vunpack.c.h.b16 %v1611
    %v1713 = vunpack.c.l.b16 %v1612
    %v1714 = vunpack.c.h.b16 %v1612
    %v1715 = vpack.c.b16 %v1653, %v1651
    %v1716 = vpack.c.b16 %v1654, %v1652
    %v1717 = vpack.c.b16 %v1657, %v1655
    %v1718 = vpack.c.b16 %v1658, %v1656
    %v1719 = vpack.c.b16 %v1661, %v1659
    %v1720 = vpack.c.b16 %v1662, %v1660
    %v1721 = vpack.c.b16 %v1665, %v1663
    %v1722 = vpack.c.b16 %v1666, %v1664
    %v1723 = vpack.c.b16 %v1669, %v1667
    %v1724 = vpack.c.b16 %v1670, %v1668
    %v1725 = vpack.c.b16 %v1673, %v1671
    %v1726 = vpack.c.b16 %v1674, %v1672
    %v1727 = vpack.c.b16 %v1677, %v1675
    %v1728 = vpack.c.b16 %v1678, %v1676
    %v1729 = vpack.c.b16 %v1681, %v1679
    %v1730 = vpack.c.b16 %v1682, %v1680
    %v1731 = vpack.c.b16 %v1685, %v1683
    %v1732 = vpack.c.b16 %v1686, %v1684
    %v1733 = vpack.c.b16 %v1689, %v1687
    %v1734 = vpack.c.b16 %v1690, %v1688
    %v1735 = vpack.c.b16 %v1693, %v1691
    %v1736 = vpack.c.b16 %v1694, %v1692
    %v1737 = vpack.c.b16 %v1697, %v1695
    %v1738 = vpack.c.b16 %v1698, %v1696
    %v1739 = vpack.c.b16 %v1701, %v1699
    %v1740 = vpack.c.b16 %v1702, %v1700
    %v1741 = vpack.c.b16 %v1705, %v1703
    %v1742 = vpack.c.b16 %v1706, %v1704
    %v1743 = vpack.c.b16 %v1709, %v1707
    %v1744 = vpack.c.b16 %v1710, %v1708
    %v1745 = vpack.c.b16 %v1713, %v1711
    %v1746 = vpack.c.b16 %v1714, %v1712
    %1779 = vmatpush.bf16.msra.mxu0 %v1729
    %1780 = vmatpush.bf16.msra.mxu0 %v1727
    %1781 = vmatpush.bf16.msra.mxu0 %v1725
    %1782 = vmatpush.bf16.msra.mxu0 %v1723
    %1783 = vmatpush.bf16.msra.mxu0 %v1721
    %1784 = vmatpush.bf16.msra.mxu0 %v1719
    %1785 = vmatpush.bf16.msra.mxu0 %v1717
    %1786 = vmatpush.bf16.msra.mxu0 %v1715
    %1787 = vmatmul.bf16.gmra.mxu0 %v1565
    %v1788 = vpop.f32.mrf.mxu0
    %v1789 = vadd.f32 %v1615, %v1788
    %v1790 = vpop.f32.mrf.mxu0
    %v1791 = vadd.f32 %v1615, %v1790
    %1792 = vmatmul.bf16.gmra.mxu0 %v1567
    %v1793 = vpop.f32.mrf.mxu0
    %v1794 = vadd.f32 %v1615, %v1793
    %v1795 = vpop.f32.mrf.mxu0
    %v1796 = vadd.f32 %v1615, %v1795
    %1797 = vmatmul.bf16.gmra.mxu0 %v1569
    %v1798 = vpop.f32.mrf.mxu0
    %v1799 = vadd.f32 %v1615, %v1798
    %v1800 = vpop.f32.mrf.mxu0
    %v1801 = vadd.f32 %v1615, %v1800
    %1802 = vmatmul.bf16.gmra.mxu0 %v1571
    %v1803 = vpop.f32.mrf.mxu0
    %v1804 = vadd.f32 %v1615, %v1803
    %v1805 = vpop.f32.mrf.mxu0
    %v1806 = vadd.f32 %v1615, %v1805
    %1807 = vmatmul.bf16.gmra.mxu0 %v1573
    %v1808 = vpop.f32.mrf.mxu0
    %v1809 = vadd.f32 %v1615, %v1808
    %v1810 = vpop.f32.mrf.mxu0
    %v1811 = vadd.f32 %v1615, %v1810
    %1812 = vmatmul.bf16.gmra.mxu0 %v1575
    %v1813 = vpop.f32.mrf.mxu0
    %v1814 = vadd.f32 %v1615, %v1813
    %v1815 = vpop.f32.mrf.mxu0
    %v1816 = vadd.f32 %v1615, %v1815
    %1817 = vmatmul.bf16.gmra.mxu0 %v1577
    %v1818 = vpop.f32.mrf.mxu0
    %v1819 = vadd.f32 %v1615, %v1818
    %v1820 = vpop.f32.mrf.mxu0
    %v1821 = vadd.f32 %v1615, %v1820
    %1822 = vmatmul.bf16.gmra.mxu0 %v1579
    %v1823 = vpop.f32.mrf.mxu0
    %v1824 = vadd.f32 %v1615, %v1823
    %v1825 = vpop.f32.mrf.mxu0
    %v1826 = vadd.f32 %v1615, %v1825
    %1827 = vdwg.mxu0
    %1828 = vmatpush.bf16.msra.mxu0 %v1745
    %1829 = vmatpush.bf16.msra.mxu0 %v1743
    %1830 = vmatpush.bf16.msra.mxu0 %v1741
    %1831 = vmatpush.bf16.msra.mxu0 %v1739
    %1832 = vmatpush.bf16.msra.mxu0 %v1737
    %1833 = vmatpush.bf16.msra.mxu0 %v1735
    %1834 = vmatpush.bf16.msra.mxu0 %v1733
    %1835 = vmatpush.bf16.msra.mxu0 %v1731
    %1836 = vmatmul.bf16.gmra.mxu0 %v1566
    %v1837 = vpop.f32.mrf.mxu0
    %v1838 = vadd.f32 %v1789, %v1837
    %v1839 = vpop.f32.mrf.mxu0
    %v1840 = vadd.f32 %v1791, %v1839
    %1841 = vmatmul.bf16.gmra.mxu0 %v1568
    %v1842 = vpop.f32.mrf.mxu0
    %v1843 = vadd.f32 %v1794, %v1842
    %v1844 = vpop.f32.mrf.mxu0
    %v1845 = vadd.f32 %v1796, %v1844
    %1846 = vmatmul.bf16.gmra.mxu0 %v1570
    %v1847 = vpop.f32.mrf.mxu0
    %v1848 = vadd.f32 %v1799, %v1847
    %v1849 = vpop.f32.mrf.mxu0
    %v1850 = vadd.f32 %v1801, %v1849
    %1851 = vmatmul.bf16.gmra.mxu0 %v1572
    %v1852 = vpop.f32.mrf.mxu0
    %v1853 = vadd.f32 %v1804, %v1852
    %v1854 = vpop.f32.mrf.mxu0
    %v1855 = vadd.f32 %v1806, %v1854
    %1856 = vmatmul.bf16.gmra.mxu0 %v1574
    %v1857 = vpop.f32.mrf.mxu0
    %v1858 = vadd.f32 %v1809, %v1857
    %v1859 = vpop.f32.mrf.mxu0
    %v1860 = vadd.f32 %v1811, %v1859
    %1861 = vmatmul.bf16.gmra.mxu0 %v1576
    %v1862 = vpop.f32.mrf.mxu0
    %v1863 = vadd.f32 %v1814, %v1862
    %v1864 = vpop.f32.mrf.mxu0
    %v1865 = vadd.f32 %v1816, %v1864
    %1866 = vmatmul.bf16.gmra.mxu0 %v1578
    %v1867 = vpop.f32.mrf.mxu0
    %v1868 = vadd.f32 %v1819, %v1867
    %v1869 = vpop.f32.mrf.mxu0
    %v1870 = vadd.f32 %v1821, %v1869
    %1871 = vmatmul.bf16.gmra.mxu0 %v1580
    %v1872 = vpop.f32.mrf.mxu0
    %v1873 = vadd.f32 %v1824, %v1872
    %v1874 = vpop.f32.mrf.mxu0
    %v1875 = vadd.f32 %v1826, %v1874
    %1876 = vdwg.mxu0
    %1877 = vmatpush.bf16.msra.mxu0 %v1730
    %1878 = vmatpush.bf16.msra.mxu0 %v1728
    %1879 = vmatpush.bf16.msra.mxu0 %v1726
    %1880 = vmatpush.bf16.msra.mxu0 %v1724
    %1881 = vmatpush.bf16.msra.mxu0 %v1722
    %1882 = vmatpush.bf16.msra.mxu0 %v1720
    %1883 = vmatpush.bf16.msra.mxu0 %v1718
    %1884 = vmatpush.bf16.msra.mxu0 %v1716
    %1885 = vmatmul.bf16.gmra.mxu0 %v1565
    %v1886 = vpop.f32.mrf.mxu0
    %v1887 = vadd.f32 %v1616, %v1886
    %v1888 = vpop.f32.mrf.mxu0
    %v1889 = vadd.f32 %v1616, %v1888
    %1890 = vmatmul.bf16.gmra.mxu0 %v1567
    %v1891 = vpop.f32.mrf.mxu0
    %v1892 = vadd.f32 %v1616, %v1891
    %v1893 = vpop.f32.mrf.mxu0
    %v1894 = vadd.f32 %v1616, %v1893
    %1895 = vmatmul.bf16.gmra.mxu0 %v1569
    %v1896 = vpop.f32.mrf.mxu0
    %v1897 = vadd.f32 %v1616, %v1896
    %v1898 = vpop.f32.mrf.mxu0
    %v1899 = vadd.f32 %v1616, %v1898
    %1900 = vmatmul.bf16.gmra.mxu0 %v1571
    %v1901 = vpop.f32.mrf.mxu0
    %v1902 = vadd.f32 %v1616, %v1901
    %v1903 = vpop.f32.mrf.mxu0
    %v1904 = vadd.f32 %v1616, %v1903
    %1905 = vmatmul.bf16.gmra.mxu0 %v1573
    %v1906 = vpop.f32.mrf.mxu0
    %v1907 = vadd.f32 %v1616, %v1906
    %v1908 = vpop.f32.mrf.mxu0
    %v1909 = vadd.f32 %v1616, %v1908
    %1910 = vmatmul.bf16.gmra.mxu0 %v1575
    %v1911 = vpop.f32.mrf.mxu0
    %v1912 = vadd.f32 %v1616, %v1911
    %v1913 = vpop.f32.mrf.mxu0
    %v1914 = vadd.f32 %v1616, %v1913
    %1915 = vmatmul.bf16.gmra.mxu0 %v1577
    %v1916 = vpop.f32.mrf.mxu0
    %v1917 = vadd.f32 %v1616, %v1916
    %v1918 = vpop.f32.mrf.mxu0
    %v1919 = vadd.f32 %v1616, %v1918
    %1920 = vmatmul.bf16.gmra.mxu0 %v1579
    %v1921 = vpop.f32.mrf.mxu0
    %v1922 = vadd.f32 %v1616, %v1921
    %v1923 = vpop.f32.mrf.mxu0
    %v1924 = vadd.f32 %v1616, %v1923
    %1925 = vdwg.mxu0
    %1926 = vmatpush.bf16.msra.mxu0 %v1746
    %1927 = vmatpush.bf16.msra.mxu0 %v1744
    %1928 = vmatpush.bf16.msra.mxu0 %v1742
    %1929 = vmatpush.bf16.msra.mxu0 %v1740
    %1930 = vmatpush.bf16.msra.mxu0 %v1738
    %1931 = vmatpush.bf16.msra.mxu0 %v1736
    %1932 = vmatpush.bf16.msra.mxu0 %v1734
    %1933 = vmatpush.bf16.msra.mxu0 %v1732
    %1934 = vmatmul.bf16.gmra.mxu0 %v1566
    %v1935 = vpop.f32.mrf.mxu0
    %v1936 = vadd.f32 %v1887, %v1935
    %v1937 = vpop.f32.mrf.mxu0
    %v1938 = vadd.f32 %v1889, %v1937
    %1939 = vmatmul.bf16.gmra.mxu0 %v1568
    %v1940 = vpop.f32.mrf.mxu0
    %v1941 = vadd.f32 %v1892, %v1940
    %v1942 = vpop.f32.mrf.mxu0
    %v1943 = vadd.f32 %v1894, %v1942
    %1944 = vmatmul.bf16.gmra.mxu0 %v1570
    %v1945 = vpop.f32.mrf.mxu0
    %v1946 = vadd.f32 %v1897, %v1945
    %v1947 = vpop.f32.mrf.mxu0
    %v1948 = vadd.f32 %v1899, %v1947
    %1949 = vmatmul.bf16.gmra.mxu0 %v1572
    %v1950 = vpop.f32.mrf.mxu0
    %v1951 = vadd.f32 %v1902, %v1950
    %v1952 = vpop.f32.mrf.mxu0
    %v1953 = vadd.f32 %v1904, %v1952
    %1954 = vmatmul.bf16.gmra.mxu0 %v1574
    %v1955 = vpop.f32.mrf.mxu0
    %v1956 = vadd.f32 %v1907, %v1955
    %v1957 = vpop.f32.mrf.mxu0
    %v1958 = vadd.f32 %v1909, %v1957
    %1959 = vmatmul.bf16.gmra.mxu0 %v1576
    %v1960 = vpop.f32.mrf.mxu0
    %v1961 = vadd.f32 %v1912, %v1960
    %v1962 = vpop.f32.mrf.mxu0
    %v1963 = vadd.f32 %v1914, %v1962
    %1964 = vmatmul.bf16.gmra.mxu0 %v1578
    %v1965 = vpop.f32.mrf.mxu0
    %v1966 = vadd.f32 %v1917, %v1965
    %v1967 = vpop.f32.mrf.mxu0
    %v1968 = vadd.f32 %v1919, %v1967
    %1969 = vmatmul.bf16.gmra.mxu0 %v1580
    %v1970 = vpop.f32.mrf.mxu0
    %v1971 = vadd.f32 %v1922, %v1970
    %v1972 = vpop.f32.mrf.mxu0
    %v1973 = vadd.f32 %v1924, %v1972
    %1974 = vdwg.mxu0
    %v1975 = vmax.f32 %v1838, 0.0
    %v1976 = vmax.f32 %v1936, 0.0
    %v1977 = vmax.f32 %v1840, 0.0
    %v1978 = vmax.f32 %v1938, 0.0
    %v1979 = vmax.f32 %v1843, 0.0
    %v1980 = vmax.f32 %v1941, 0.0
    %v1981 = vmax.f32 %v1845, 0.0
    %v1982 = vmax.f32 %v1943, 0.0
    %v1983 = vmax.f32 %v1848, 0.0
    %v1984 = vmax.f32 %v1946, 0.0
    %v1985 = vmax.f32 %v1850, 0.0
    %v1986 = vmax.f32 %v1948, 0.0
    %v1987 = vmax.f32 %v1853, 0.0
    %v1988 = vmax.f32 %v1951, 0.0
    %v1989 = vmax.f32 %v1855, 0.0
    %v1990 = vmax.f32 %v1953, 0.0
    %v1991 = vmax.f32 %v1858, 0.0
    %v1992 = vmax.f32 %v1956, 0.0
    %v1993 = vmax.f32 %v1860, 0.0
    %v1994 = vmax.f32 %v1958, 0.0
    %v1995 = vmax.f32 %v1863, 0.0
    %v1996 = vmax.f32 %v1961, 0.0
    %v1997 = vmax.f32 %v1865, 0.0
    %v1998 = vmax.f32 %v1963, 0.0
    %v1999 = vmax.f32 %v1868, 0.0
    %v2000 = vmax.f32 %v1966, 0.0
    %v2001 = vmax.f32 %v1870, 0.0
    %v2002 = vmax.f32 %v1968, 0.0
    %v2003 = vmax.f32 %v1873, 0.0
    %v2004 = vmax.f32 %v1971, 0.0
    %v2005 = vmax.f32 %v1875, 0.0
    %v2006 = vmax.f32 %v1973, 0.0
    %v2007 = vpack.c.bf16 %v1977, %v1975
    %v2008 = vpack.c.bf16 %v1978, %v1976
    %v2009 = vpack.c.bf16 %v1981, %v1979
    %v2010 = vpack.c.bf16 %v1982, %v1980
    %v2011 = vpack.c.bf16 %v1985, %v1983
    %v2012 = vpack.c.bf16 %v1986, %v1984
    %v2013 = vpack.c.bf16 %v1989, %v1987
    %v2014 = vpack.c.bf16 %v1990, %v1988
    %v2015 = vpack.c.bf16 %v1993, %v1991
    %v2016 = vpack.c.bf16 %v1994, %v1992
    %v2017 = vpack.c.bf16 %v1997, %v1995
    %v2018 = vpack.c.bf16 %v1998, %v1996
    %v2019 = vpack.c.bf16 %v2001, %v1999
    %v2020 = vpack.c.bf16 %v2002, %v2000
    %v2021 = vpack.c.bf16 %v2005, %v2003
    %v2022 = vpack.c.bf16 %v2006, %v2004
    %v2023 = vld [vmem:[#allocation5] sm:$0xf]
    %v2024 = vld [vmem:[#allocation5 + $0x4] sm:$0xf]
    %v2025 = vld [vmem:[#allocation5 + $0x8] sm:$0xf]
    %v2026 = vld [vmem:[#allocation5 + $0xc] sm:$0xf]
    %v2027 = vld [vmem:[#allocation5 + $0x10] sm:$0xf]
    %v2028 = vld [vmem:[#allocation5 + $0x14] sm:$0xf]
    %v2029 = vld [vmem:[#allocation5 + $0x18] sm:$0xf]
    %v2030 = vld [vmem:[#allocation5 + $0x1c] sm:$0xf]
    %v2031 = vld [vmem:[#allocation5 + $0x20] sm:$0xf]
    %v2032 = vld [vmem:[#allocation5 + $0x24] sm:$0xf]
    %v2033 = vld [vmem:[#allocation5 + $0x28] sm:$0xf]
    %v2034 = vld [vmem:[#allocation5 + $0x2c] sm:$0xf]
    %v2035 = vld [vmem:[#allocation5 + $0x30] sm:$0xf]
    %v2036 = vld [vmem:[#allocation5 + $0x34] sm:$0xf]
    %v2037 = vld [vmem:[#allocation5 + $0x38] sm:$0xf]
    %v2038 = vld [vmem:[#allocation5 + $0x3c] sm:$0xf]
    %v2039 = vld [vmem:[#allocation5 + $0x40] sm:$0xf]
    %v2040 = vld [vmem:[#allocation5 + $0x44] sm:$0xf]
    %v2041 = vld [vmem:[#allocation5 + $0x48] sm:$0xf]
    %v2042 = vld [vmem:[#allocation5 + $0x4c] sm:$0xf]
    %v2043 = vld [vmem:[#allocation5 + $0x50] sm:$0xf]
    %v2044 = vld [vmem:[#allocation5 + $0x54] sm:$0xf]
    %v2045 = vld [vmem:[#allocation5 + $0x58] sm:$0xf]
    %v2046 = vld [vmem:[#allocation5 + $0x5c] sm:$0xf]
    %v2047 = vld [vmem:[#allocation5 + $0x60] sm:$0xf]
    %v2048 = vld [vmem:[#allocation5 + $0x64] sm:$0xf]
    %v2049 = vld [vmem:[#allocation5 + $0x68] sm:$0xf]
    %v2050 = vld [vmem:[#allocation5 + $0x6c] sm:$0xf]
    %v2051 = vld [vmem:[#allocation5 + $0x70] sm:$0xf]
    %v2052 = vld [vmem:[#allocation5 + $0x74] sm:$0xf]
    %v2053 = vld [vmem:[#allocation5 + $0x78] sm:$0xf]
    %v2054 = vld [vmem:[#allocation5 + $0x7c] sm:$0xf]
    %v2055 = vld [vmem:[%s6] sm:$0x1]
    %v2057 = vperm.slane %v2055, 0
    %v2091 = vunpack.c.l.b16 %v2023
    %v2092 = vunpack.c.l.b16 %v2024
    %v2093 = vunpack.c.l.b16 %v2025
    %v2094 = vunpack.c.l.b16 %v2026
    %v2095 = vunpack.c.l.b16 %v2027
    %v2096 = vunpack.c.l.b16 %v2028
    %v2097 = vunpack.c.l.b16 %v2029
    %v2098 = vunpack.c.l.b16 %v2030
    %v2099 = vunpack.c.l.b16 %v2031
    %v2100 = vunpack.c.l.b16 %v2032
    %v2101 = vunpack.c.l.b16 %v2033
    %v2102 = vunpack.c.l.b16 %v2034
    %v2103 = vunpack.c.l.b16 %v2035
    %v2104 = vunpack.c.l.b16 %v2036
    %v2105 = vunpack.c.l.b16 %v2037
    %v2106 = vunpack.c.l.b16 %v2038
    %v2107 = vunpack.c.l.b16 %v2039
    %v2108 = vunpack.c.l.b16 %v2040
    %v2109 = vunpack.c.l.b16 %v2041
    %v2110 = vunpack.c.l.b16 %v2042
    %v2111 = vunpack.c.l.b16 %v2043
    %v2112 = vunpack.c.l.b16 %v2044
    %v2113 = vunpack.c.l.b16 %v2045
    %v2114 = vunpack.c.l.b16 %v2046
    %v2115 = vunpack.c.l.b16 %v2047
    %v2116 = vunpack.c.l.b16 %v2048
    %v2117 = vunpack.c.l.b16 %v2049
    %v2118 = vunpack.c.l.b16 %v2050
    %v2119 = vunpack.c.l.b16 %v2051
    %v2120 = vunpack.c.l.b16 %v2052
    %v2121 = vunpack.c.l.b16 %v2053
    %v2122 = vunpack.c.l.b16 %v2054
    %v2123 = vpack.c.b16 %v2092, %v2091
    %v2124 = vpack.c.b16 %v2094, %v2093
    %v2125 = vpack.c.b16 %v2096, %v2095
    %v2126 = vpack.c.b16 %v2098, %v2097
    %v2127 = vpack.c.b16 %v2100, %v2099
    %v2128 = vpack.c.b16 %v2102, %v2101
    %v2129 = vpack.c.b16 %v2104, %v2103
    %v2130 = vpack.c.b16 %v2106, %v2105
    %v2131 = vpack.c.b16 %v2108, %v2107
    %v2132 = vpack.c.b16 %v2110, %v2109
    %v2133 = vpack.c.b16 %v2112, %v2111
    %v2134 = vpack.c.b16 %v2114, %v2113
    %v2135 = vpack.c.b16 %v2116, %v2115
    %v2136 = vpack.c.b16 %v2118, %v2117
    %v2137 = vpack.c.b16 %v2120, %v2119
    %v2138 = vpack.c.b16 %v2122, %v2121
    %2155 = vmatpush.bf16.msra.mxu0 %v2130
    %2156 = vmatpush.bf16.msra.mxu0 %v2129
    %2157 = vmatpush.bf16.msra.mxu0 %v2128
    %2158 = vmatpush.bf16.msra.mxu0 %v2127
    %2159 = vmatpush.bf16.msra.mxu0 %v2126
    %2160 = vmatpush.bf16.msra.mxu0 %v2125
    %2161 = vmatpush.bf16.msra.mxu0 %v2124
    %2162 = vmatpush.bf16.msra.mxu0 %v2123
    %2163 = vmatmul.bf16.gmra.mxu0 %v2007
    %v2164 = vpop.f32.mrf.mxu0
    %v2165 = vadd.f32 %v2057, %v2164
    %v2166 = vpop.f32.mrf.mxu0
    %v2167 = vadd.f32 %v2057, %v2166
    %2168 = vmatmul.bf16.gmra.mxu0 %v2009
    %v2169 = vpop.f32.mrf.mxu0
    %v2170 = vadd.f32 %v2057, %v2169
    %v2171 = vpop.f32.mrf.mxu0
    %v2172 = vadd.f32 %v2057, %v2171
    %2173 = vmatmul.bf16.gmra.mxu0 %v2011
    %v2174 = vpop.f32.mrf.mxu0
    %v2175 = vadd.f32 %v2057, %v2174
    %v2176 = vpop.f32.mrf.mxu0
    %v2177 = vadd.f32 %v2057, %v2176
    %2178 = vmatmul.bf16.gmra.mxu0 %v2013
    %v2179 = vpop.f32.mrf.mxu0
    %v2180 = vadd.f32 %v2057, %v2179
    %v2181 = vpop.f32.mrf.mxu0
    %v2182 = vadd.f32 %v2057, %v2181
    %2183 = vmatmul.bf16.gmra.mxu0 %v2015
    %v2184 = vpop.f32.mrf.mxu0
    %v2185 = vadd.f32 %v2057, %v2184
    %v2186 = vpop.f32.mrf.mxu0
    %v2187 = vadd.f32 %v2057, %v2186
    %2188 = vmatmul.bf16.gmra.mxu0 %v2017
    %v2189 = vpop.f32.mrf.mxu0
    %v2190 = vadd.f32 %v2057, %v2189
    %v2191 = vpop.f32.mrf.mxu0
    %v2192 = vadd.f32 %v2057, %v2191
    %2193 = vmatmul.bf16.gmra.mxu0 %v2019
    %v2194 = vpop.f32.mrf.mxu0
    %v2195 = vadd.f32 %v2057, %v2194
    %v2196 = vpop.f32.mrf.mxu0
    %v2197 = vadd.f32 %v2057, %v2196
    %2198 = vmatmul.bf16.gmra.mxu0 %v2021
    %v2199 = vpop.f32.mrf.mxu0
    %v2200 = vadd.f32 %v2057, %v2199
    %v2201 = vpop.f32.mrf.mxu0
    %v2202 = vadd.f32 %v2057, %v2201
    %2203 = vdwg.mxu0
    %2204 = vmatpush.bf16.msra.mxu0 %v2138
    %2205 = vmatpush.bf16.msra.mxu0 %v2137
    %2206 = vmatpush.bf16.msra.mxu0 %v2136
    %2207 = vmatpush.bf16.msra.mxu0 %v2135
    %2208 = vmatpush.bf16.msra.mxu0 %v2134
    %2209 = vmatpush.bf16.msra.mxu0 %v2133
    %2210 = vmatpush.bf16.msra.mxu0 %v2132
    %2211 = vmatpush.bf16.msra.mxu0 %v2131
    %2212 = vmatmul.bf16.gmra.mxu0 %v2008
    %v2213 = vpop.f32.mrf.mxu0
    %v2214 = vadd.f32 %v2165, %v2213
    %v2215 = vpop.f32.mrf.mxu0
    %v2216 = vadd.f32 %v2167, %v2215
    %2217 = vmatmul.bf16.gmra.mxu0 %v2010
    %v2218 = vpop.f32.mrf.mxu0
    %v2219 = vadd.f32 %v2170, %v2218
    %v2220 = vpop.f32.mrf.mxu0
    %v2221 = vadd.f32 %v2172, %v2220
    %2222 = vmatmul.bf16.gmra.mxu0 %v2012
    %v2223 = vpop.f32.mrf.mxu0
    %v2224 = vadd.f32 %v2175, %v2223
    %v2225 = vpop.f32.mrf.mxu0
    %v2226 = vadd.f32 %v2177, %v2225
    %2227 = vmatmul.bf16.gmra.mxu0 %v2014
    %v2228 = vpop.f32.mrf.mxu0
    %v2229 = vadd.f32 %v2180, %v2228
    %v2230 = vpop.f32.mrf.mxu0
    %v2231 = vadd.f32 %v2182, %v2230
    %2232 = vmatmul.bf16.gmra.mxu0 %v2016
    %v2233 = vpop.f32.mrf.mxu0
    %v2234 = vadd.f32 %v2185, %v2233
    %v2235 = vpop.f32.mrf.mxu0
    %v2236 = vadd.f32 %v2187, %v2235
    %2237 = vmatmul.bf16.gmra.mxu0 %v2018
    %v2238 = vpop.f32.mrf.mxu0
    %v2239 = vadd.f32 %v2190, %v2238
    %v2240 = vpop.f32.mrf.mxu0
    %v2241 = vadd.f32 %v2192, %v2240
    %2242 = vmatmul.bf16.gmra.mxu0 %v2020
    %v2243 = vpop.f32.mrf.mxu0
    %v2244 = vadd.f32 %v2195, %v2243
    %v2245 = vpop.f32.mrf.mxu0
    %v2246 = vadd.f32 %v2197, %v2245
    %2247 = vmatmul.bf16.gmra.mxu0 %v2022
    %v2248 = vpop.f32.mrf.mxu0
    %v2249 = vadd.f32 %v2200, %v2248
    %v2250 = vpop.f32.mrf.mxu0
    %v2251 = vadd.f32 %v2202, %v2250
    %2252 = vdwg.mxu0
    %2253 = vst [vmem:[#allocation7] sm:$0xff] %v2214
    %2254 = vst [vmem:[#allocation7 + $0x8] sm:$0xff] %v2216
    %2255 = vst [vmem:[#allocation7 + $0x10] sm:$0xff] %v2219
    %2256 = vst [vmem:[#allocation7 + $0x18] sm:$0xff] %v2221
    %2257 = vst [vmem:[#allocation7 + $0x20] sm:$0xff] %v2224
    %2258 = vst [vmem:[#allocation7 + $0x28] sm:$0xff] %v2226
    %2259 = vst [vmem:[#allocation7 + $0x30] sm:$0xff] %v2229
    %2260 = vst [vmem:[#allocation7 + $0x38] sm:$0xff] %v2231
    %2261 = vst [vmem:[#allocation7 + $0x40] sm:$0xff] %v2234
    %2262 = vst [vmem:[#allocation7 + $0x48] sm:$0xff] %v2236
    %2263 = vst [vmem:[#allocation7 + $0x50] sm:$0xff] %v2239
    %2264 = vst [vmem:[#allocation7 + $0x58] sm:$0xff] %v2241
    %2265 = vst [vmem:[#allocation7 + $0x60] sm:$0xff] %v2244
    %2266 = vst [vmem:[#allocation7 + $0x68] sm:$0xff] %v2246
    %2267 = vst [vmem:[#allocation7 + $0x70] sm:$0xff] %v2249
    %2268 = vst [vmem:[#allocation7 + $0x78] sm:$0xff] %v2251
    // Predicated region
    $region38: #{_lambda_.1} parent=1 // pred_check
      _
    $region39: #{_lambda_.1} parent=1 // pred_check_branch
      %2270 = sbr.rel (0) target = $region41
    $region40: #{_lambda_.1} parent=1 // pred_region
      %2272 = vsyncadd [#allocation4], 1920
      %s2273 = sshll.u32 [#allocation7], 4
      %s2274 = int_to_ptr.vmem [resolvable:$true] %s2273
      %s2275 = sshll.u32 %s7, 4
      %s2276 = int_to_ptr.hbm [resolvable:$true] %s2275
      %2281 = dma.vmem_to_hbm [thread:$0]  %s2274, 128, %s2276, [#allocation4], 128, 128, 8
    $region41: #{_lambda_.1} parent=1 // pred_fallthru
      _
    // Predicated region
    $region42: #{_lambda_.1} parent=1 // pred_check
      _
    $region43: #{_lambda_.1} parent=1 // pred_check_branch
      %2283 = sbr.rel (0) target = $region45
    $region44: #{_lambda_.1} parent=1 // pred_region
      %2285 = dma.done [#allocation4], 2048
    $region45: #{_lambda_.1} parent=1 // pred_fallthru
      _
    %2286 = vsyncpa [#allocation3], 1
    %2287 = vsyncpa [#allocation6], 1
    %2288 = vsyncpa [#allocation4], 1

</llo_original>
